<compile_context>
chip_gen: v7x
topology: tpu7x:2x2x1
jax: 0.10.0
libtpu: 0.0.40
codegen_flags: <defaults>
</compile_context>

<pallas_src>
import functools

import jax
import jax.numpy as jnp
from jax.experimental import pallas as pl
from jax.experimental.pallas import tpu as pltpu

LN_EPS = 1e-5              # PyTorch nn.LayerNorm default
SOFTPLUS_THRESHOLD = 20.0  # PyTorch nn.Softplus default (beta=1, threshold=20)


def _round_up(a, b):
    return (a + b - 1) // b * b


def _softplus(x):
    # Matches torch.nn.functional.softplus(x, beta=1, threshold=20).
    # exp(x) may overflow to +inf in the discarded branch (inf, not NaN).
    return jnp.where(x > SOFTPLUS_THRESHOLD, x, jnp.log1p(jnp.exp(x)))


def _layernorm_fused(x, gamma, beta):
    # Single-pass statistics: sum(x) and sum(x*x) so both lane reductions can
    # issue back-to-back and the x*x VPU pass overlaps the first reduce.
    # Affine folded: out = (x - mean) * (rsqrt(var+eps) * gamma) + beta.
    h = x.shape[-1]
    s1 = jnp.sum(x, axis=-1, keepdims=True)
    s2 = jnp.sum(x * x, axis=-1, keepdims=True)
    mean = s1 * (1.0 / h)
    var = s2 * (1.0 / h) - mean * mean
    scale = jax.lax.rsqrt(var + LN_EPS) * gamma
    return (x - mean) * scale + beta


def _layernorm_ref(x, gamma, beta):
    # Two-pass form, mirroring PyTorch LayerNorm (biased variance).
    mean = jnp.mean(x, axis=-1, keepdims=True)
    c = x - mean
    var = jnp.mean(c * c, axis=-1, keepdims=True)
    return c * jax.lax.rsqrt(var + LN_EPS) * gamma + beta


def mlp_lam_kernel(x_ref,            # (tm, C)   f32  (cast to bf16 in-kernel)
                   w1_ref, v1_ref,   # (C, H1) bf16, (3, H1) f32 [b1;g1;beta1]
                   w2_ref, v2_ref,   # (H1, H2) bf16, (4, H2) f32 [b2;g2;beta2;b3...]
                   w3_ref,           # (1, H2) bf16
                   o_ref,            # (1, tm)  f32 (lane-dense row)
                   *, tm_sub, n_sub):
    w1 = w1_ref[...]
    w2 = w2_ref[...]
    w3 = w3_ref[...]
    v1 = v1_ref[...]
    v2 = v2_ref[...]
    b1, g1, be1 = v1[0:1, :], v1[1:2, :], v1[2:3, :]
    b2, g2, be2 = v2[0:1, :], v2[1:2, :], v2[2:3, :]
    b3 = v2[3:4, 0:1]                                     # (1, 1)

    # Sub-tile the row dimension with *static* offsets (unrolled) so the MXU
    # matmuls of one chunk overlap the VPU/EUP elementwise work of the
    # previous one.
    for s in range(n_sub):
        r0 = s * tm_sub

        # Layer 1: Linear -> LayerNorm -> Softplus (f32 math after the dot).
        xb = x_ref[r0:r0 + tm_sub, :].astype(jnp.bfloat16)
        h = jnp.dot(xb, w1, preferred_element_type=jnp.float32) + b1
        h = _softplus(_layernorm_fused(h, g1, be1))

        # Layer 2: Linear -> LayerNorm -> Softplus.
        h = jnp.dot(h.astype(jnp.bfloat16), w2,
                    preferred_element_type=jnp.float32) + b2
        h = _softplus(_layernorm_fused(h, g2, be2))

        # Head Linear(H2 -> 1) as (1,H2) . (tm_sub,H2)^T so the per-chunk
        # result is a lane-dense (1, tm_sub) row (no 1-lane masked stores).
        y = jax.lax.dot_general(
            w3, h.astype(jnp.bfloat16),
            dimension_numbers=(((1,), (1,)), ((), ())),
            preferred_element_type=jnp.float32)           # (1, tm_sub)
        o_ref[:, r0:r0 + tm_sub] = (y + b3).astype(o_ref.dtype)


def mlp_lam(x, params, *, tm=2048):
    """x: (N, in_channels) float32. Returns (N, 1) float32."""
    N, C = x.shape
    (w1, b1, g1, be1, w2, b2, g2, be2, w3, b3) = params
    H1 = w1.shape[1]
    H2 = w2.shape[1]

    # ---- Row-tile sizing ---------------------------------------------------
    n128 = _round_up(max(N, 1), 128)
    tm = _round_up(max(128, min(tm, 2048)), 128)
    tm = min(tm, n128)
    # Keep >= 2 grid steps when the batch allows it so both of v7x's
    # TensorCores get work (grid axis is marked "parallel").
    if n128 >= 256:
        tm = max(128, min(tm, _round_up(n128 // 2, 128)))
    num_tiles = pl.cdiv(N, tm)
    n_out = num_tiles * tm

    # In-kernel sub-tiling of the row dimension (unrolled chunks).
    tm_sub = next(c for c in (512, 256, 128) if tm % c == 0)
    n_sub = tm // tm_sub

    # x is streamed as f32 (cast to bf16 inside the kernel).  No full-array
    # pad: for N >= tm the ragged last block is handled by Pallas (garbage
    # tail rows are independent and sliced off).  Only a tiny batch is padded
    # so its single block stays in bounds.
    if N < tm:
        x = jnp.pad(x, ((0, tm - N), (0, 0)))

    # Small constant operands (weights are tiny; one-off bf16 cast is cheap).
    w1_bf = w1.astype(jnp.bfloat16)
    w2_bf = w2.astype(jnp.bfloat16)
    w3_row = w3.reshape(1, H2).astype(jnp.bfloat16)
    vec1 = jnp.concatenate([b1, g1, be1], axis=0)                     # (3, H1)
    vec2 = jnp.concatenate(
        [b2, g2, be2, jnp.pad(b3, ((0, 0), (0, H2 - 1)))], axis=0)    # (4, H2)

    full = lambda shape: pl.BlockSpec(shape, lambda i: (0, 0))
    kernel = functools.partial(mlp_lam_kernel, tm_sub=tm_sub, n_sub=n_sub)

    out = pl.pallas_call(
        kernel,
        out_shape=jax.ShapeDtypeStruct((1, n_out), jnp.float32),
        grid_spec=pltpu.PrefetchScalarGridSpec(
            num_scalar_prefetch=0,
            grid=(num_tiles,),
            in_specs=[
                pl.BlockSpec((tm, C), lambda i: (i, 0)),   # x row tile (f32)
                full((C, H1)), full((3, H1)),
                full((H1, H2)), full((4, H2)),
                full((1, H2)),
            ],
            out_specs=pl.BlockSpec((1, tm), lambda i: (0, i)),
        ),
        compiler_params=pltpu.CompilerParams(
            dimension_semantics=("parallel",),
            vmem_limit_bytes=48 * 1024 * 1024),
    )(x, w1_bf, vec1, w2_bf, vec2, w3_row)

    # (1, n_out) lane-dense row -> (N, 1) column.
    return out.reshape(n_out, 1)[:N]


def init_params(key, in_channels, hidden_dims=(128, 64)):
    """Deterministic synthetic parameters (shapes match the PyTorch module)."""
    dims = [in_channels] + list(hidden_dims)
    params = []
    keys = jax.random.split(key, 2 * len(hidden_dims) + 2)
    ki = 0
    for li in range(len(hidden_dims)):
        fan_in, fan_out = dims[li], dims[li + 1]
        scale = 1.0 / jnp.sqrt(fan_in)
        w = jax.random.uniform(keys[ki], (fan_in, fan_out), jnp.float32,
                               -scale, scale); ki += 1
        b = jax.random.uniform(keys[ki], (1, fan_out), jnp.float32,
                               -scale, scale); ki += 1
        gamma = jnp.ones((1, fan_out), jnp.float32)
        beta = jnp.zeros((1, fan_out), jnp.float32)
        params += [w, b, gamma, beta]
    fan_in = hidden_dims[-1]
    scale = 1.0 / jnp.sqrt(fan_in)
    w3 = jax.random.uniform(keys[ki], (fan_in, 1), jnp.float32,
                            -scale, scale); ki += 1
    b3 = jax.random.uniform(keys[ki], (1, 1), jnp.float32, -scale, scale)
    params += [w3, b3]
    return tuple(params)


def mlp_lam_reference(x, params):
    """Pure-JAX reference mirroring the kernel's bf16 matmul inputs (f32 math,
    PyTorch-style two-pass LayerNorm)."""
    (w1, b1, g1, be1, w2, b2, g2, be2, w3, b3) = params
    h = jnp.dot(x.astype(jnp.bfloat16), w1.astype(jnp.bfloat16),
                preferred_element_type=jnp.float32) + b1
    h = _softplus(_layernorm_ref(h, g1, be1))
    h = jnp.dot(h.astype(jnp.bfloat16), w2.astype(jnp.bfloat16),
                preferred_element_type=jnp.float32) + b2
    h = _softplus(_layernorm_ref(h, g2, be2))
    return jnp.dot(h.astype(jnp.bfloat16), w3.astype(jnp.bfloat16),
                   preferred_element_type=jnp.float32) + b3


if __name__ == "__main__":
    key = jax.random.PRNGKey(0)
    k_x, k_p = jax.random.split(key)

    C = 32
    hidden_dims = (128, 64)
    params = init_params(k_p, C, hidden_dims)

    # Small batch: single-tile path (tm clamps to 128, batch padded in-wrapper).
    x_small = jax.random.normal(k_x, (16, C), jnp.float32)
    out_small = jax.block_until_ready(mlp_lam(x_small, params))
    ref_small = mlp_lam_reference(x_small, params)
    assert out_small.shape == (16, 1), out_small.shape
    assert bool(jnp.all(jnp.isfinite(out_small))), "non-finite output (small)"
    assert jnp.allclose(out_small, ref_small, atol=5e-3, rtol=5e-3), (
        f"mismatch (small): max abs diff {jnp.max(jnp.abs(out_small - ref_small))}")

    # Larger batch: multi-tile grid with a ragged last block (no wrapper pad
    # of x; garbage tail rows are sliced off before any check).
    x_big = jax.random.normal(k_x, (300, C), jnp.float32)
    out_big = jax.block_until_ready(mlp_lam(x_big, params))
    ref_big = mlp_lam_reference(x_big, params)
    assert out_big.shape == (300, 1), out_big.shape
    assert bool(jnp.all(jnp.isfinite(out_big))), "non-finite output (big)"
    assert jnp.allclose(out_big, ref_big, atol=5e-3, rtol=5e-3), (
        f"mismatch (big): max abs diff {jnp.max(jnp.abs(out_big - ref_big))}")

    print("KERNEL_OK")
</pallas_src>

<mosaic_0001>
module attributes {stable_mosaic.version = 11 : i64} {
  func.func @mlp_lam_kernel(%arg0: i32, %arg1: memref<128x32xf32, #tpu.memory_space<vmem>>, %arg2: memref<32x128xbf16, #tpu.memory_space<vmem>>, %arg3: memref<3x128xf32, #tpu.memory_space<vmem>>, %arg4: memref<128x64xbf16, #tpu.memory_space<vmem>>, %arg5: memref<4x64xf32, #tpu.memory_space<vmem>>, %arg6: memref<1x64xbf16, #tpu.memory_space<vmem>>, %arg7: memref<1x128xf32, #tpu.memory_space<vmem>>) attributes {dimension_semantics = [#tpu.dimension_semantics<parallel>], iteration_bounds = array<i64: 1>, scalar_prefetch = 0 : i64, scratch_operands = 0 : i64, tpu.core_type = #tpu.core_type<tc>, window_params = [{transform_indices = @transform_0, window_bounds = array<i64: 128, 32>}, {pipeline_mode = #tpu.pipeline_mode<synchronous>, transform_indices = @transform_1, window_bounds = array<i64: 32, 128>}, {pipeline_mode = #tpu.pipeline_mode<synchronous>, transform_indices = @transform_2, window_bounds = array<i64: 3, 128>}, {pipeline_mode = #tpu.pipeline_mode<synchronous>, transform_indices = @transform_3, window_bounds = array<i64: 128, 64>}, {pipeline_mode = #tpu.pipeline_mode<synchronous>, transform_indices = @transform_4, window_bounds = array<i64: 4, 64>}, {pipeline_mode = #tpu.pipeline_mode<synchronous>, transform_indices = @transform_5, window_bounds = array<i64: 1, 64>}, {transform_indices = @transform_6, window_bounds = array<i64: 1, 128>}]} {
    %c0 = arith.constant 0 : index
    %c0_0 = arith.constant 0 : index
    %0 = vector.load %arg2[%c0, %c0_0] : memref<32x128xbf16, #tpu.memory_space<vmem>>, vector<32x128xbf16>
    %c0_1 = arith.constant 0 : index
    %c0_2 = arith.constant 0 : index
    %1 = vector.load %arg4[%c0_1, %c0_2] : memref<128x64xbf16, #tpu.memory_space<vmem>>, vector<128x64xbf16>
    %c0_3 = arith.constant 0 : index
    %c0_4 = arith.constant 0 : index
    %2 = vector.load %arg6[%c0_3, %c0_4] : memref<1x64xbf16, #tpu.memory_space<vmem>>, vector<1x64xbf16>
    %c0_5 = arith.constant 0 : index
    %c0_6 = arith.constant 0 : index
    %3 = vector.load %arg3[%c0_5, %c0_6] : memref<3x128xf32, #tpu.memory_space<vmem>>, vector<3x128xf32>
    %c0_7 = arith.constant 0 : index
    %c0_8 = arith.constant 0 : index
    %4 = vector.load %arg5[%c0_7, %c0_8] : memref<4x64xf32, #tpu.memory_space<vmem>>, vector<4x64xf32>
    %5 = vector.extract_strided_slice %3 {offsets = [0, 0], sizes = [1, 128], strides = [1, 1]} : vector<3x128xf32> to vector<1x128xf32>
    %6 = vector.extract_strided_slice %3 {offsets = [1, 0], sizes = [1, 128], strides = [1, 1]} : vector<3x128xf32> to vector<1x128xf32>
    %7 = vector.extract_strided_slice %3 {offsets = [2, 0], sizes = [1, 128], strides = [1, 1]} : vector<3x128xf32> to vector<1x128xf32>
    %8 = vector.extract_strided_slice %4 {offsets = [0, 0], sizes = [1, 64], strides = [1, 1]} : vector<4x64xf32> to vector<1x64xf32>
    %9 = vector.extract_strided_slice %4 {offsets = [1, 0], sizes = [1, 64], strides = [1, 1]} : vector<4x64xf32> to vector<1x64xf32>
    %10 = vector.extract_strided_slice %4 {offsets = [2, 0], sizes = [1, 64], strides = [1, 1]} : vector<4x64xf32> to vector<1x64xf32>
    %11 = vector.extract_strided_slice %4 {offsets = [3, 0], sizes = [1, 1], strides = [1, 1]} : vector<4x64xf32> to vector<1x1xf32>
    %c0_9 = arith.constant 0 : index
    %c0_10 = arith.constant 0 : index
    %12 = vector.load %arg1[%c0_9, %c0_10] : memref<128x32xf32, #tpu.memory_space<vmem>>, vector<128x32xf32>
    %13 = arith.truncf %12 : vector<128x32xf32> to vector<128x32xbf16>
    %cst = arith.constant dense<0.000000e+00> : vector<128x128xf32>
    %14 = tpu.matmul %13, %0, %cst {dimension_numbers = #tpu.dot_dimension_numbers<[1], [0], [0], [1], [0, 0, 1, 1], [], []>} : vector<128x32xbf16>, vector<32x128xbf16>, vector<128x128xf32> -> vector<128x128xf32>
    %15 = vector.broadcast %5 : vector<1x128xf32> to vector<128x128xf32>
    %16 = arith.addf %14, %15 : vector<128x128xf32>
    %cst_11 = arith.constant dense<0.000000e+00> : vector<128xf32>
    %17 = vector.multi_reduction <add>, %16, %cst_11 [1] : vector<128x128xf32> to vector<128xf32>
    %18 = vector.shape_cast %17 : vector<128xf32> to vector<128x1xf32>
    %19 = arith.mulf %16, %16 : vector<128x128xf32>
    %cst_12 = arith.constant dense<0.000000e+00> : vector<128xf32>
    %20 = vector.multi_reduction <add>, %19, %cst_12 [1] : vector<128x128xf32> to vector<128xf32>
    %21 = vector.shape_cast %20 : vector<128xf32> to vector<128x1xf32>
    %cst_13 = arith.constant 7.812500e-03 : f32
    %22 = vector.broadcast %cst_13 : f32 to vector<128x1xf32>
    %23 = arith.mulf %18, %22 : vector<128x1xf32>
    %cst_14 = arith.constant 7.812500e-03 : f32
    %24 = vector.broadcast %cst_14 : f32 to vector<128x1xf32>
    %25 = arith.mulf %21, %24 : vector<128x1xf32>
    %26 = arith.mulf %23, %23 : vector<128x1xf32>
    %27 = arith.subf %25, %26 : vector<128x1xf32>
    %cst_15 = arith.constant 9.99999974E-6 : f32
    %28 = vector.broadcast %cst_15 : f32 to vector<128x1xf32>
    %29 = arith.addf %27, %28 : vector<128x1xf32>
    %30 = math.rsqrt %29 : vector<128x1xf32>
    %31 = vector.broadcast %30 : vector<128x1xf32> to vector<128x128xf32>
    %32 = vector.broadcast %6 : vector<1x128xf32> to vector<128x128xf32>
    %33 = arith.mulf %31, %32 : vector<128x128xf32>
    %34 = vector.broadcast %23 : vector<128x1xf32> to vector<128x128xf32>
    %35 = arith.subf %16, %34 : vector<128x128xf32>
    %36 = arith.mulf %35, %33 : vector<128x128xf32>
    %37 = vector.broadcast %7 : vector<1x128xf32> to vector<128x128xf32>
    %38 = arith.addf %36, %37 : vector<128x128xf32>
    %cst_16 = arith.constant 2.000000e+01 : f32
    %39 = vector.broadcast %cst_16 : f32 to vector<128x128xf32>
    %40 = arith.cmpf ogt, %38, %39 : vector<128x128xf32>
    %41 = math.exp %38 : vector<128x128xf32>
    %42 = math.log1p %41 : vector<128x128xf32>
    %43 = arith.select %40, %38, %42 : vector<128x128xi1>, vector<128x128xf32>
    %44 = arith.truncf %43 : vector<128x128xf32> to vector<128x128xbf16>
    %cst_17 = arith.constant dense<0.000000e+00> : vector<128x64xf32>
    %45 = tpu.matmul %44, %1, %cst_17 {dimension_numbers = #tpu.dot_dimension_numbers<[1], [0], [0], [1], [0, 0, 1, 1], [], []>} : vector<128x128xbf16>, vector<128x64xbf16>, vector<128x64xf32> -> vector<128x64xf32>
    %46 = vector.broadcast %8 : vector<1x64xf32> to vector<128x64xf32>
    %47 = arith.addf %45, %46 : vector<128x64xf32>
    %cst_18 = arith.constant dense<0.000000e+00> : vector<128xf32>
    %48 = vector.multi_reduction <add>, %47, %cst_18 [1] : vector<128x64xf32> to vector<128xf32>
    %49 = vector.shape_cast %48 : vector<128xf32> to vector<128x1xf32>
    %50 = arith.mulf %47, %47 : vector<128x64xf32>
    %cst_19 = arith.constant dense<0.000000e+00> : vector<128xf32>
    %51 = vector.multi_reduction <add>, %50, %cst_19 [1] : vector<128x64xf32> to vector<128xf32>
    %52 = vector.shape_cast %51 : vector<128xf32> to vector<128x1xf32>
    %cst_20 = arith.constant 1.562500e-02 : f32
    %53 = vector.broadcast %cst_20 : f32 to vector<128x1xf32>
    %54 = arith.mulf %49, %53 : vector<128x1xf32>
    %cst_21 = arith.constant 1.562500e-02 : f32
    %55 = vector.broadcast %cst_21 : f32 to vector<128x1xf32>
    %56 = arith.mulf %52, %55 : vector<128x1xf32>
    %57 = arith.mulf %54, %54 : vector<128x1xf32>
    %58 = arith.subf %56, %57 : vector<128x1xf32>
    %cst_22 = arith.constant 9.99999974E-6 : f32
    %59 = vector.broadcast %cst_22 : f32 to vector<128x1xf32>
    %60 = arith.addf %58, %59 : vector<128x1xf32>
    %61 = math.rsqrt %60 : vector<128x1xf32>
    %62 = vector.broadcast %61 : vector<128x1xf32> to vector<128x64xf32>
    %63 = vector.broadcast %9 : vector<1x64xf32> to vector<128x64xf32>
    %64 = arith.mulf %62, %63 : vector<128x64xf32>
    %65 = vector.broadcast %54 : vector<128x1xf32> to vector<128x64xf32>
    %66 = arith.subf %47, %65 : vector<128x64xf32>
    %67 = arith.mulf %66, %64 : vector<128x64xf32>
    %68 = vector.broadcast %10 : vector<1x64xf32> to vector<128x64xf32>
    %69 = arith.addf %67, %68 : vector<128x64xf32>
    %cst_23 = arith.constant 2.000000e+01 : f32
    %70 = vector.broadcast %cst_23 : f32 to vector<128x64xf32>
    %71 = arith.cmpf ogt, %69, %70 : vector<128x64xf32>
    %72 = math.exp %69 : vector<128x64xf32>
    %73 = math.log1p %72 : vector<128x64xf32>
    %74 = arith.select %71, %69, %73 : vector<128x64xi1>, vector<128x64xf32>
    %75 = arith.truncf %74 : vector<128x64xf32> to vector<128x64xbf16>
    %cst_24 = arith.constant dense<0.000000e+00> : vector<1x128xf32>
    %76 = tpu.matmul %2, %75, %cst_24 {dimension_numbers = #tpu.dot_dimension_numbers<[1], [1], [0], [0], [0, 0, 1, 0], [], []>} : vector<1x64xbf16>, vector<128x64xbf16>, vector<1x128xf32> -> vector<1x128xf32>
    %77 = vector.broadcast %11 : vector<1x1xf32> to vector<1x128xf32>
    %78 = arith.addf %76, %77 : vector<1x128xf32>
    %c0_25 = arith.constant 0 : index
    %c0_26 = arith.constant 0 : index
    %79 = vector.load %arg7[%c0_25, %c0_26] : memref<1x128xf32, #tpu.memory_space<vmem>>, vector<1x128xf32>
    tpu.vector_store %arg7[%c0_25, %c0_26], %78 {strides = array<i32>} : memref<1x128xf32, #tpu.memory_space<vmem>>, vector<1x128xf32>,
    return
  }
  func.func @transform_0(%arg0: i32) -> (i32, i32) {
    %c0_i32 = arith.constant 0 : i32
    %c0_i32_0 = arith.constant 0 : i32
    return %arg0, %c0_i32 : i32, i32
  }
  func.func @transform_1(%arg0: i32) -> (i32, i32) {
    %c0_i32 = arith.constant 0 : i32
    %c0_i32_0 = arith.constant 0 : i32
    %c0_i32_1 = arith.constant 0 : i32
    return %c0_i32, %c0_i32_0 : i32, i32
  }
  func.func @transform_2(%arg0: i32) -> (i32, i32) {
    %c0_i32 = arith.constant 0 : i32
    %c0_i32_0 = arith.constant 0 : i32
    %c0_i32_1 = arith.constant 0 : i32
    return %c0_i32, %c0_i32_0 : i32, i32
  }
  func.func @transform_3(%arg0: i32) -> (i32, i32) {
    %c0_i32 = arith.constant 0 : i32
    %c0_i32_0 = arith.constant 0 : i32
    %c0_i32_1 = arith.constant 0 : i32
    return %c0_i32, %c0_i32_0 : i32, i32
  }
  func.func @transform_4(%arg0: i32) -> (i32, i32) {
    %c0_i32 = arith.constant 0 : i32
    %c0_i32_0 = arith.constant 0 : i32
    %c0_i32_1 = arith.constant 0 : i32
    return %c0_i32, %c0_i32_0 : i32, i32
  }
  func.func @transform_5(%arg0: i32) -> (i32, i32) {
    %c0_i32 = arith.constant 0 : i32
    %c0_i32_0 = arith.constant 0 : i32
    %c0_i32_1 = arith.constant 0 : i32
    return %c0_i32, %c0_i32_0 : i32, i32
  }
  func.func @transform_6(%arg0: i32) -> (i32, i32) {
    %c0_i32 = arith.constant 0 : i32
    %c0_i32_0 = arith.constant 0 : i32
    return %c0_i32, %arg0 : i32, i32
  }
}

</mosaic_0001>

<llo_original>
// kernel: tpu_custom_call.1
$region0: #{tpu_custom_call.1}
  #allocation0 [shape = 'u32[]', space=smem, size = 0x4, offset = 0x4, fixed_abs, tag = 'smem constant byte address 0x4 - core index']
  #allocation1 [shape = 'u32[144,128]{1,0:T(1,128)}', space=vmem, size = 0x12000, scoped, tag = 'internal scratch']
  %s0 = inlined_call_operand.vmem [shape: f32[128,32], index: 0, kind: input, shape index: {}]
  %s1 = inlined_call_operand.vmem [shape: bf16[32,128], index: 1, kind: input, shape index: {}]
  %s2 = inlined_call_operand.vmem [shape: f32[3,128], index: 2, kind: input, shape index: {}]
  %s3 = inlined_call_operand.vmem [shape: bf16[128,64], index: 3, kind: input, shape index: {}]
  %s4 = inlined_call_operand.vmem [shape: f32[4,64], index: 4, kind: input, shape index: {}]
  %s5 = inlined_call_operand.vmem [shape: bf16[1,64], index: 5, kind: input, shape index: {}]
  %s6 = inlined_call_operand.hbm [shape: f32[1,128], index: 6, kind: output, shape index: {}]
  %s7 = sld [smem:[#allocation0]]
  $region34: #{tpu_custom_call.1} parent=0
    _
  %s9 = ssub.s32 1, %s7
  %s10 = scalar_select 0, %s9, %s7
  $region1: #{tpu_custom_call.1} parent=0
    #allocation2 [shape = 'u8[512]{0}', space=vmem, size = 0x400, scoped, tag = 'output window, operand 0, single buffered']
    #allocation3 [shape = 's32[1]{0}', space=sflag, size = 0x4, scoped, tag = 'scoped memory for tpu_custom_call.1']
    %11 = vsyncpa [#allocation3], 0
    // Predicated region
    $region2: #{tpu_custom_call.1} parent=1 // pred_check
      _
    $region3: #{tpu_custom_call.1} parent=1 // pred_check_branch
      %13 = sbr.rel (0) target = $region5
    $region4: #{tpu_custom_call.1} parent=1 // pred_region
      _
    $region5: #{tpu_custom_call.1} parent=1 // pred_fallthru
      _
    // Predicated region
    $region6: #{tpu_custom_call.1} parent=1 // pred_check
      _
    $region7: #{tpu_custom_call.1} parent=1 // pred_check_branch
      %15 = sbr.rel (0) target = $region9
    $region8: #{tpu_custom_call.1} parent=1 // pred_region
      _
    $region9: #{tpu_custom_call.1} parent=1 // pred_fallthru
      _
    // Predicated region
    $region10: #{tpu_custom_call.1} parent=1 // pred_check
      _
    $region11: #{tpu_custom_call.1} parent=1 // pred_check_branch
      %17 = sbr.rel (0) target = $region13
    $region12: #{tpu_custom_call.1} parent=1 // pred_region
      _
    $region13: #{tpu_custom_call.1} parent=1 // pred_fallthru
      _
    // Predicated region
    $region14: #{tpu_custom_call.1} parent=1 // pred_check
      _
    $region15: #{tpu_custom_call.1} parent=1 // pred_check_branch
      %19 = sbr.rel (0) target = $region17
    $region16: #{tpu_custom_call.1} parent=1 // pred_region
      _
    $region17: #{tpu_custom_call.1} parent=1 // pred_fallthru
      _
    // Predicated region
    $region18: #{tpu_custom_call.1} parent=1 // pred_check
      _
    $region19: #{tpu_custom_call.1} parent=1 // pred_check_branch
      %21 = sbr.rel (0) target = $region21
    $region20: #{tpu_custom_call.1} parent=1 // pred_region
      _
    $region21: #{tpu_custom_call.1} parent=1 // pred_fallthru
      _
    // Predicated region
    $region22: #{tpu_custom_call.1} parent=1 // pred_check
      _
    $region23: #{tpu_custom_call.1} parent=1 // pred_check_branch
      %23 = sbr.rel (0) target = $region25
    $region24: #{tpu_custom_call.1} parent=1 // pred_region
      _
    $region25: #{tpu_custom_call.1} parent=1 // pred_fallthru
      _
    %v25 = vld [vmem:[%s1] sm:$0xf]
    %v26 = vld [vmem:[%s1 + $0x4] sm:$0xf]
    %v27 = vld [vmem:[%s1 + $0x8] sm:$0xf]
    %v28 = vld [vmem:[%s1 + $0xc] sm:$0xf]
    %v29 = vld [vmem:[%s3] sm:$0xf]
    %v30 = vld [vmem:[%s3 + $0x4] sm:$0xf]
    %v31 = vld [vmem:[%s3 + $0x8] sm:$0xf]
    %v32 = vld [vmem:[%s3 + $0xc] sm:$0xf]
    %v33 = vld [vmem:[%s3 + $0x10] sm:$0xf]
    %v34 = vld [vmem:[%s3 + $0x14] sm:$0xf]
    %v35 = vld [vmem:[%s3 + $0x18] sm:$0xf]
    %v36 = vld [vmem:[%s3 + $0x1c] sm:$0xf]
    %v37 = vld [vmem:[%s3 + $0x20] sm:$0xf]
    %v38 = vld [vmem:[%s3 + $0x24] sm:$0xf]
    %v39 = vld [vmem:[%s3 + $0x28] sm:$0xf]
    %v40 = vld [vmem:[%s3 + $0x2c] sm:$0xf]
    %v41 = vld [vmem:[%s3 + $0x30] sm:$0xf]
    %v42 = vld [vmem:[%s3 + $0x34] sm:$0xf]
    %v43 = vld [vmem:[%s3 + $0x38] sm:$0xf]
    %v44 = vld [vmem:[%s3 + $0x3c] sm:$0xf]
    %v45 = vld [vmem:[%s5] sm:$0x1]
    %v46 = vld [vmem:[%s2] sm:$0x7]
    %v47 = vld [vmem:[%s4] sm:$0xf]
    %v48 = vld [vmem:[%s0] sm:$0xff]
    %v49 = vld [vmem:[%s0 + $0x8] sm:$0xff]
    %v50 = vld [vmem:[%s0 + $0x10] sm:$0xff]
    %v51 = vld [vmem:[%s0 + $0x18] sm:$0xff]
    %v52 = vld [vmem:[%s0 + $0x20] sm:$0xff]
    %v53 = vld [vmem:[%s0 + $0x28] sm:$0xff]
    %v54 = vld [vmem:[%s0 + $0x30] sm:$0xff]
    %v55 = vld [vmem:[%s0 + $0x38] sm:$0xff]
    %v56 = vld [vmem:[%s0 + $0x40] sm:$0xff]
    %v57 = vld [vmem:[%s0 + $0x48] sm:$0xff]
    %v58 = vld [vmem:[%s0 + $0x50] sm:$0xff]
    %v59 = vld [vmem:[%s0 + $0x58] sm:$0xff]
    %v60 = vld [vmem:[%s0 + $0x60] sm:$0xff]
    %v61 = vld [vmem:[%s0 + $0x68] sm:$0xff]
    %v62 = vld [vmem:[%s0 + $0x70] sm:$0xff]
    %v63 = vld [vmem:[%s0 + $0x78] sm:$0xff]
    %v64 = vpack.c.bf16 %v49, %v48
    %v65 = vpack.c.bf16 %v51, %v50
    %v66 = vpack.c.bf16 %v53, %v52
    %v67 = vpack.c.bf16 %v55, %v54
    %v68 = vpack.c.bf16 %v57, %v56
    %v69 = vpack.c.bf16 %v59, %v58
    %v70 = vpack.c.bf16 %v61, %v60
    %v71 = vpack.c.bf16 %v63, %v62
    %v72 = vlaneseq
    %v73 = vshrl.u32 %v72, 7
    %v74 = vsub.s32 0, %v73
    %v75 = vrot.slane %v46, %v74
    %v80 = vunpack.c.l.b16 %v25
    %v81 = vunpack.c.l.b16 %v26
    %v82 = vunpack.c.l.b16 %v27
    %v83 = vunpack.c.l.b16 %v28
    %v84 = vpack.c.b16 %v81, %v80
    %v85 = vpack.c.b16 %v83, %v82
    %vm88 = vcmask 261120
    %v90 = vsel %vm88, %v64, 0
    %v93 = vsel %vm88, %v65, 0
    %v96 = vsel %vm88, %v66, 0
    %v99 = vsel %vm88, %v67, 0
    %v102 = vsel %vm88, %v68, 0
    %v105 = vsel %vm88, %v69, 0
    %v108 = vsel %vm88, %v70, 0
    %v111 = vsel %vm88, %v71, 0
    %113 = vmatprep.subr.bf16.mxu0 0
    %114 = vmatpush1.bf16.msra.mxu0 %v84
    %115 = vmatprep.subr.bf16.mxu0 0
    %116 = vmatpush1.bf16.msra.mxu0 %v85
    %117 = vmatprep.subr.bf16.mxu0 0
    %118 = vmatpush1.bf16.msra.mxu0 0
    %119 = vmatprep.subr.bf16.mxu0 0
    %120 = vmatpush1.bf16.msra.mxu0 0
    %121 = vmatprep.subr.bf16.mxu0 0
    %122 = vmatpush1.bf16.msra.mxu0 0
    %123 = vmatprep.subr.bf16.mxu0 0
    %124 = vmatpush1.bf16.msra.mxu0 0
    %125 = vmatprep.subr.bf16.mxu0 0
    %126 = vmatpush1.bf16.msra.mxu0 0
    %127 = vmatprep.subr.bf16.mxu0 0
    %128 = vmatpush1.bf16.msra.mxu0 0
    %129 = vmatprep.subr.bf16.mxu0 0
    %130 = vmatpush1.bf16.msra.mxu0 0
    %131 = vmatprep.subr.bf16.mxu0 0
    %132 = vmatpush1.bf16.msra.mxu0 0
    %133 = vmatprep.subr.bf16.mxu0 0
    %134 = vmatpush1.bf16.msra.mxu0 0
    %135 = vmatprep.subr.bf16.mxu0 0
    %136 = vmatpush1.bf16.msra.mxu0 0
    %137 = vmatprep.subr.bf16.mxu0 0
    %138 = vmatpush1.bf16.msra.mxu0 0
    %139 = vmatprep.subr.bf16.mxu0 0
    %140 = vmatpush1.bf16.msra.mxu0 0
    %141 = vmatprep.subr.bf16.mxu0 0
    %142 = vmatpush1.bf16.msra.mxu0 0
    %143 = vmatprep.subr.bf16.mxu0 0
    %144 = vmatpush1.bf16.msra.mxu0 0
    %145 = vmatprep.mubr.bf16.mxu0 0
    %146 = vmatmul.mubr.bf16.gmra.mrb[0].mxu0 %v90
    %v147 = vpop.f32.mrb[0].mxu0
    %v148 = vadd.f32 %v75, %v147
    %v149 = vpop.f32.mrb[0].mxu0
    %v150 = vpop.f32.mrb[0].mxu0
    %v151 = vadd.f32 %v75, %v150
    %v152 = vpop.f32.mrb[0].mxu0
    %153 = vmatprep.mubr.bf16.mxu0 0
    %154 = vmatmul.mubr.bf16.gmra.mrb[0].mxu0 %v93
    %v155 = vpop.f32.mrb[0].mxu0
    %v156 = vadd.f32 %v75, %v155
    %v157 = vpop.f32.mrb[0].mxu0
    %v158 = vpop.f32.mrb[0].mxu0
    %v159 = vadd.f32 %v75, %v158
    %v160 = vpop.f32.mrb[0].mxu0
    %161 = vmatprep.mubr.bf16.mxu0 0
    %162 = vmatmul.mubr.bf16.gmra.mrb[0].mxu0 %v96
    %v163 = vpop.f32.mrb[0].mxu0
    %v164 = vadd.f32 %v75, %v163
    %v165 = vpop.f32.mrb[0].mxu0
    %v166 = vpop.f32.mrb[0].mxu0
    %v167 = vadd.f32 %v75, %v166
    %v168 = vpop.f32.mrb[0].mxu0
    %169 = vmatprep.mubr.bf16.mxu0 0
    %170 = vmatmul.mubr.bf16.gmra.mrb[0].mxu0 %v99
    %v171 = vpop.f32.mrb[0].mxu0
    %v172 = vadd.f32 %v75, %v171
    %v173 = vpop.f32.mrb[0].mxu0
    %v174 = vpop.f32.mrb[0].mxu0
    %v175 = vadd.f32 %v75, %v174
    %v176 = vpop.f32.mrb[0].mxu0
    %177 = vmatprep.mubr.bf16.mxu0 0
    %178 = vmatmul.mubr.bf16.gmra.mrb[0].mxu0 %v102
    %v179 = vpop.f32.mrb[0].mxu0
    %v180 = vadd.f32 %v75, %v179
    %v181 = vpop.f32.mrb[0].mxu0
    %v182 = vpop.f32.mrb[0].mxu0
    %v183 = vadd.f32 %v75, %v182
    %v184 = vpop.f32.mrb[0].mxu0
    %185 = vmatprep.mubr.bf16.mxu0 0
    %186 = vmatmul.mubr.bf16.gmra.mrb[0].mxu0 %v105
    %v187 = vpop.f32.mrb[0].mxu0
    %v188 = vadd.f32 %v75, %v187
    %v189 = vpop.f32.mrb[0].mxu0
    %v190 = vpop.f32.mrb[0].mxu0
    %v191 = vadd.f32 %v75, %v190
    %v192 = vpop.f32.mrb[0].mxu0
    %193 = vmatprep.mubr.bf16.mxu0 0
    %194 = vmatmul.mubr.bf16.gmra.mrb[0].mxu0 %v108
    %v195 = vpop.f32.mrb[0].mxu0
    %v196 = vadd.f32 %v75, %v195
    %v197 = vpop.f32.mrb[0].mxu0
    %v198 = vpop.f32.mrb[0].mxu0
    %v199 = vadd.f32 %v75, %v198
    %v200 = vpop.f32.mrb[0].mxu0
    %201 = vmatprep.mubr.bf16.mxu0 0
    %202 = vmatmul.mubr.bf16.gmra.mrb[0].mxu0 %v111
    %v203 = vpop.f32.mrb[0].mxu0
    %v204 = vadd.f32 %v75, %v203
    %v205 = vpop.f32.mrb[0].mxu0
    %v206 = vpop.f32.mrb[0].mxu0
    %v207 = vadd.f32 %v75, %v206
    %v208 = vpop.f32.mrb[0].mxu0
    %209 = vdwg.mxu0
    %210 = vadd.xlane.f32.xlu0 %v148
    %v211 = vpop.xlane.xlu0 %210
    %212 = vadd.xlane.f32.xlu0 %v151
    %v213 = vpop.xlane.xlu0 %212
    %214 = vadd.xlane.f32.xlu0 %v156
    %v215 = vpop.xlane.xlu0 %214
    %216 = vadd.xlane.f32.xlu0 %v159
    %v217 = vpop.xlane.xlu0 %216
    %218 = vadd.xlane.f32.xlu0 %v164
    %v219 = vpop.xlane.xlu0 %218
    %220 = vadd.xlane.f32.xlu0 %v167
    %v221 = vpop.xlane.xlu0 %220
    %222 = vadd.xlane.f32.xlu0 %v172
    %v223 = vpop.xlane.xlu0 %222
    %224 = vadd.xlane.f32.xlu0 %v175
    %v225 = vpop.xlane.xlu0 %224
    %226 = vadd.xlane.f32.xlu0 %v180
    %v227 = vpop.xlane.xlu0 %226
    %228 = vadd.xlane.f32.xlu0 %v183
    %v229 = vpop.xlane.xlu0 %228
    %230 = vadd.xlane.f32.xlu0 %v188
    %v231 = vpop.xlane.xlu0 %230
    %232 = vadd.xlane.f32.xlu0 %v191
    %v233 = vpop.xlane.xlu0 %232
    %234 = vadd.xlane.f32.xlu0 %v196
    %v235 = vpop.xlane.xlu0 %234
    %236 = vadd.xlane.f32.xlu0 %v199
    %v237 = vpop.xlane.xlu0 %236
    %238 = vadd.xlane.f32.xlu0 %v204
    %v239 = vpop.xlane.xlu0 %238
    %240 = vadd.xlane.f32.xlu0 %v207
    %v241 = vpop.xlane.xlu0 %240
    %v242 = vmul.f32 %v148, %v148
    %v243 = vmul.f32 %v151, %v151
    %v244 = vmul.f32 %v156, %v156
    %v245 = vmul.f32 %v159, %v159
    %v246 = vmul.f32 %v164, %v164
    %v247 = vmul.f32 %v167, %v167
    %v248 = vmul.f32 %v172, %v172
    %v249 = vmul.f32 %v175, %v175
    %v250 = vmul.f32 %v180, %v180
    %v251 = vmul.f32 %v183, %v183
    %v252 = vmul.f32 %v188, %v188
    %v253 = vmul.f32 %v191, %v191
    %v254 = vmul.f32 %v196, %v196
    %v255 = vmul.f32 %v199, %v199
    %v256 = vmul.f32 %v204, %v204
    %v257 = vmul.f32 %v207, %v207
    %258 = vadd.xlane.f32.xlu0 %v242
    %v259 = vpop.xlane.xlu0 %258
    %260 = vadd.xlane.f32.xlu0 %v243
    %v261 = vpop.xlane.xlu0 %260
    %262 = vadd.xlane.f32.xlu0 %v244
    %v263 = vpop.xlane.xlu0 %262
    %264 = vadd.xlane.f32.xlu0 %v245
    %v265 = vpop.xlane.xlu0 %264
    %266 = vadd.xlane.f32.xlu0 %v246
    %v267 = vpop.xlane.xlu0 %266
    %268 = vadd.xlane.f32.xlu0 %v247
    %v269 = vpop.xlane.xlu0 %268
    %270 = vadd.xlane.f32.xlu0 %v248
    %v271 = vpop.xlane.xlu0 %270
    %272 = vadd.xlane.f32.xlu0 %v249
    %v273 = vpop.xlane.xlu0 %272
    %274 = vadd.xlane.f32.xlu0 %v250
    %v275 = vpop.xlane.xlu0 %274
    %276 = vadd.xlane.f32.xlu0 %v251
    %v277 = vpop.xlane.xlu0 %276
    %278 = vadd.xlane.f32.xlu0 %v252
    %v279 = vpop.xlane.xlu0 %278
    %280 = vadd.xlane.f32.xlu0 %v253
    %v281 = vpop.xlane.xlu0 %280
    %282 = vadd.xlane.f32.xlu0 %v254
    %v283 = vpop.xlane.xlu0 %282
    %284 = vadd.xlane.f32.xlu0 %v255
    %v285 = vpop.xlane.xlu0 %284
    %286 = vadd.xlane.f32.xlu0 %v256
    %v287 = vpop.xlane.xlu0 %286
    %288 = vadd.xlane.f32.xlu0 %v257
    %v289 = vpop.xlane.xlu0 %288
    %v290 = vmul.f32 %v211, 0.0078125
    %v291 = vmul.f32 %v213, 0.0078125
    %v292 = vmul.f32 %v215, 0.0078125
    %v293 = vmul.f32 %v217, 0.0078125
    %v294 = vmul.f32 %v219, 0.0078125
    %v295 = vmul.f32 %v221, 0.0078125
    %v296 = vmul.f32 %v223, 0.0078125
    %v297 = vmul.f32 %v225, 0.0078125
    %v298 = vmul.f32 %v227, 0.0078125
    %v299 = vmul.f32 %v229, 0.0078125
    %v300 = vmul.f32 %v231, 0.0078125
    %v301 = vmul.f32 %v233, 0.0078125
    %v302 = vmul.f32 %v235, 0.0078125
    %v303 = vmul.f32 %v237, 0.0078125
    %v304 = vmul.f32 %v239, 0.0078125
    %v305 = vmul.f32 %v241, 0.0078125
    %v306 = vmul.f32 %v259, 0.0078125
    %v307 = vmul.f32 %v261, 0.0078125
    %v308 = vmul.f32 %v263, 0.0078125
    %v309 = vmul.f32 %v265, 0.0078125
    %v310 = vmul.f32 %v267, 0.0078125
    %v311 = vmul.f32 %v269, 0.0078125
    %v312 = vmul.f32 %v271, 0.0078125
    %v313 = vmul.f32 %v273, 0.0078125
    %v314 = vmul.f32 %v275, 0.0078125
    %v315 = vmul.f32 %v277, 0.0078125
    %v316 = vmul.f32 %v279, 0.0078125
    %v317 = vmul.f32 %v281, 0.0078125
    %v318 = vmul.f32 %v283, 0.0078125
    %v319 = vmul.f32 %v285, 0.0078125
    %v320 = vmul.f32 %v287, 0.0078125
    %v321 = vmul.f32 %v289, 0.0078125
    %v322 = vmul.f32 %v290, %v290
    %v323 = vmul.f32 %v291, %v291
    %v324 = vmul.f32 %v292, %v292
    %v325 = vmul.f32 %v293, %v293
    %v326 = vmul.f32 %v294, %v294
    %v327 = vmul.f32 %v295, %v295
    %v328 = vmul.f32 %v296, %v296
    %v329 = vmul.f32 %v297, %v297
    %v330 = vmul.f32 %v298, %v298
    %v331 = vmul.f32 %v299, %v299
    %v332 = vmul.f32 %v300, %v300
    %v333 = vmul.f32 %v301, %v301
    %v334 = vmul.f32 %v302, %v302
    %v335 = vmul.f32 %v303, %v303
    %v336 = vmul.f32 %v304, %v304
    %v337 = vmul.f32 %v305, %v305
    %v338 = vsub.f32 %v306, %v322
    %v339 = vsub.f32 %v307, %v323
    %v340 = vsub.f32 %v308, %v324
    %v341 = vsub.f32 %v309, %v325
    %v342 = vsub.f32 %v310, %v326
    %v343 = vsub.f32 %v311, %v327
    %v344 = vsub.f32 %v312, %v328
    %v345 = vsub.f32 %v313, %v329
    %v346 = vsub.f32 %v314, %v330
    %v347 = vsub.f32 %v315, %v331
    %v348 = vsub.f32 %v316, %v332
    %v349 = vsub.f32 %v317, %v333
    %v350 = vsub.f32 %v318, %v334
    %v351 = vsub.f32 %v319, %v335
    %v352 = vsub.f32 %v320, %v336
    %v353 = vsub.f32 %v321, %v337
    %v354 = vadd.f32 %v338, 1e-05
    %v355 = vadd.f32 %v339, 1e-05
    %v356 = vadd.f32 %v340, 1e-05
    %v357 = vadd.f32 %v341, 1e-05
    %v358 = vadd.f32 %v342, 1e-05
    %v359 = vadd.f32 %v343, 1e-05
    %v360 = vadd.f32 %v344, 1e-05
    %v361 = vadd.f32 %v345, 1e-05
    %v362 = vadd.f32 %v346, 1e-05
    %v363 = vadd.f32 %v347, 1e-05
    %v364 = vadd.f32 %v348, 1e-05
    %v365 = vadd.f32 %v349, 1e-05
    %v366 = vadd.f32 %v350, 1e-05
    %v367 = vadd.f32 %v351, 1e-05
    %v368 = vadd.f32 %v352, 1e-05
    %v369 = vadd.f32 %v353, 1e-05
    %v370 = vrsqrt.pop %v354
    %v371 = vrsqrt.pop %v355
    %v372 = vrsqrt.pop %v356
    %v373 = vrsqrt.pop %v357
    %v374 = vrsqrt.pop %v358
    %v375 = vrsqrt.pop %v359
    %v376 = vrsqrt.pop %v360
    %v377 = vrsqrt.pop %v361
    %v378 = vrsqrt.pop %v362
    %v379 = vrsqrt.pop %v363
    %v380 = vrsqrt.pop %v364
    %v381 = vrsqrt.pop %v365
    %v382 = vrsqrt.pop %v366
    %v383 = vrsqrt.pop %v367
    %v384 = vrsqrt.pop %v368
    %v385 = vrsqrt.pop %v369
    %v386 = vlaneseq
    %v387 = vshrl.u32 %v386, 7
    %v388 = vsub.s32 1, %v387
    %v389 = vrot.slane %v46, %v388
    %v390 = vmul.f32 %v370, %v389
    %v391 = vmul.f32 %v371, %v389
    %v392 = vmul.f32 %v372, %v389
    %v393 = vmul.f32 %v373, %v389
    %v394 = vmul.f32 %v374, %v389
    %v395 = vmul.f32 %v375, %v389
    %v396 = vmul.f32 %v376, %v389
    %v397 = vmul.f32 %v377, %v389
    %v398 = vmul.f32 %v378, %v389
    %v399 = vmul.f32 %v379, %v389
    %v400 = vmul.f32 %v380, %v389
    %v401 = vmul.f32 %v381, %v389
    %v402 = vmul.f32 %v382, %v389
    %v403 = vmul.f32 %v383, %v389
    %v404 = vmul.f32 %v384, %v389
    %v405 = vmul.f32 %v385, %v389
    %v406 = vsub.f32 %v148, %v290
    %v407 = vsub.f32 %v151, %v291
    %v408 = vsub.f32 %v156, %v292
    %v409 = vsub.f32 %v159, %v293
    %v410 = vsub.f32 %v164, %v294
    %v411 = vsub.f32 %v167, %v295
    %v412 = vsub.f32 %v172, %v296
    %v413 = vsub.f32 %v175, %v297
    %v414 = vsub.f32 %v180, %v298
    %v415 = vsub.f32 %v183, %v299
    %v416 = vsub.f32 %v188, %v300
    %v417 = vsub.f32 %v191, %v301
    %v418 = vsub.f32 %v196, %v302
    %v419 = vsub.f32 %v199, %v303
    %v420 = vsub.f32 %v204, %v304
    %v421 = vsub.f32 %v207, %v305
    %v422 = vmul.f32 %v406, %v390
    %v423 = vmul.f32 %v407, %v391
    %v424 = vmul.f32 %v408, %v392
    %v425 = vmul.f32 %v409, %v393
    %v426 = vmul.f32 %v410, %v394
    %v427 = vmul.f32 %v411, %v395
    %v428 = vmul.f32 %v412, %v396
    %v429 = vmul.f32 %v413, %v397
    %v430 = vmul.f32 %v414, %v398
    %v431 = vmul.f32 %v415, %v399
    %v432 = vmul.f32 %v416, %v400
    %v433 = vmul.f32 %v417, %v401
    %v434 = vmul.f32 %v418, %v402
    %v435 = vmul.f32 %v419, %v403
    %v436 = vmul.f32 %v420, %v404
    %v437 = vmul.f32 %v421, %v405
    %v438 = vlaneseq
    %v439 = vshrl.u32 %v438, 7
    %v440 = vsub.s32 2, %v439
    %v441 = vrot.slane %v46, %v440
    %v442 = vadd.f32 %v422, %v441
    %v443 = vadd.f32 %v423, %v441
    %v444 = vadd.f32 %v424, %v441
    %v445 = vadd.f32 %v425, %v441
    %v446 = vadd.f32 %v426, %v441
    %v447 = vadd.f32 %v427, %v441
    %v448 = vadd.f32 %v428, %v441
    %v449 = vadd.f32 %v429, %v441
    %v450 = vadd.f32 %v430, %v441
    %v451 = vadd.f32 %v431, %v441
    %v452 = vadd.f32 %v432, %v441
    %v453 = vadd.f32 %v433, %v441
    %v454 = vadd.f32 %v434, %v441
    %v455 = vadd.f32 %v435, %v441
    %v456 = vadd.f32 %v436, %v441
    %v457 = vadd.f32 %v437, %v441
    %vm458 = vcmp.gt.f32.partialorder %v442, 20.0
    %vm459 = vcmp.gt.f32.partialorder %v443, 20.0
    %vm460 = vcmp.gt.f32.partialorder %v444, 20.0
    %vm461 = vcmp.gt.f32.partialorder %v445, 20.0
    %vm462 = vcmp.gt.f32.partialorder %v446, 20.0
    %vm463 = vcmp.gt.f32.partialorder %v447, 20.0
    %vm464 = vcmp.gt.f32.partialorder %v448, 20.0
    %vm465 = vcmp.gt.f32.partialorder %v449, 20.0
    %vm466 = vcmp.gt.f32.partialorder %v450, 20.0
    %vm467 = vcmp.gt.f32.partialorder %v451, 20.0
    %vm468 = vcmp.gt.f32.partialorder %v452, 20.0
    %vm469 = vcmp.gt.f32.partialorder %v453, 20.0
    %vm470 = vcmp.gt.f32.partialorder %v454, 20.0
    %vm471 = vcmp.gt.f32.partialorder %v455, 20.0
    %vm472 = vcmp.gt.f32.partialorder %v456, 20.0
    %vm473 = vcmp.gt.f32.partialorder %v457, 20.0
    %v474 = vmul.f32 %v442, 1.442695
    %v475 = vpow.pop %v474
    %v476 = vmul.f32 %v443, 1.442695
    %v477 = vpow.pop %v476
    %v478 = vmul.f32 %v444, 1.442695
    %v479 = vpow.pop %v478
    %v480 = vmul.f32 %v445, 1.442695
    %v481 = vpow.pop %v480
    %v482 = vmul.f32 %v446, 1.442695
    %v483 = vpow.pop %v482
    %v484 = vmul.f32 %v447, 1.442695
    %v485 = vpow.pop %v484
    %v486 = vmul.f32 %v448, 1.442695
    %v487 = vpow.pop %v486
    %v488 = vmul.f32 %v449, 1.442695
    %v489 = vpow.pop %v488
    %v490 = vmul.f32 %v450, 1.442695
    %v491 = vpow.pop %v490
    %v492 = vmul.f32 %v451, 1.442695
    %v493 = vpow.pop %v492
    %v494 = vmul.f32 %v452, 1.442695
    %v495 = vpow.pop %v494
    %v496 = vmul.f32 %v453, 1.442695
    %v497 = vpow.pop %v496
    %v498 = vmul.f32 %v454, 1.442695
    %v499 = vpow.pop %v498
    %v500 = vmul.f32 %v455, 1.442695
    %v501 = vpow.pop %v500
    %v502 = vmul.f32 %v456, 1.442695
    %v503 = vpow.pop %v502
    %v504 = vmul.f32 %v457, 1.442695
    %v505 = vpow.pop %v504
    %v506 = vadd.f32 %v475, 1.0
    %v507 = vlog2.pop %v506
    %v508 = vmul.f32 %v507, 0.6931472
    %v509 = vmul.f32 -0.5, %v475
    %v510 = vadd.f32 %v509, 1.0
    %v511 = vmul.f32 %v510, %v475
    %v512 = vand.u32 2147483647, %v475
    %vm513 = vcmp.lt.f32.partialorder %v512, 0.0004427343
    %v514 = vsel %vm513, %v511, %v508
    %v515 = vadd.f32 %v477, 1.0
    %v516 = vlog2.pop %v515
    %v517 = vmul.f32 %v516, 0.6931472
    %v518 = vmul.f32 -0.5, %v477
    %v519 = vadd.f32 %v518, 1.0
    %v520 = vmul.f32 %v519, %v477
    %v521 = vand.u32 2147483647, %v477
    %vm522 = vcmp.lt.f32.partialorder %v521, 0.0004427343
    %v523 = vsel %vm522, %v520, %v517
    %v524 = vadd.f32 %v479, 1.0
    %v525 = vlog2.pop %v524
    %v526 = vmul.f32 %v525, 0.6931472
    %v527 = vmul.f32 -0.5, %v479
    %v528 = vadd.f32 %v527, 1.0
    %v529 = vmul.f32 %v528, %v479
    %v530 = vand.u32 2147483647, %v479
    %vm531 = vcmp.lt.f32.partialorder %v530, 0.0004427343
    %v532 = vsel %vm531, %v529, %v526
    %v533 = vadd.f32 %v481, 1.0
    %v534 = vlog2.pop %v533
    %v535 = vmul.f32 %v534, 0.6931472
    %v536 = vmul.f32 -0.5, %v481
    %v537 = vadd.f32 %v536, 1.0
    %v538 = vmul.f32 %v537, %v481
    %v539 = vand.u32 2147483647, %v481
    %vm540 = vcmp.lt.f32.partialorder %v539, 0.0004427343
    %v541 = vsel %vm540, %v538, %v535
    %v542 = vadd.f32 %v483, 1.0
    %v543 = vlog2.pop %v542
    %v544 = vmul.f32 %v543, 0.6931472
    %v545 = vmul.f32 -0.5, %v483
    %v546 = vadd.f32 %v545, 1.0
    %v547 = vmul.f32 %v546, %v483
    %v548 = vand.u32 2147483647, %v483
    %vm549 = vcmp.lt.f32.partialorder %v548, 0.0004427343
    %v550 = vsel %vm549, %v547, %v544
    %v551 = vadd.f32 %v485, 1.0
    %v552 = vlog2.pop %v551
    %v553 = vmul.f32 %v552, 0.6931472
    %v554 = vmul.f32 -0.5, %v485
    %v555 = vadd.f32 %v554, 1.0
    %v556 = vmul.f32 %v555, %v485
    %v557 = vand.u32 2147483647, %v485
    %vm558 = vcmp.lt.f32.partialorder %v557, 0.0004427343
    %v559 = vsel %vm558, %v556, %v553
    %v560 = vadd.f32 %v487, 1.0
    %v561 = vlog2.pop %v560
    %v562 = vmul.f32 %v561, 0.6931472
    %v563 = vmul.f32 -0.5, %v487
    %v564 = vadd.f32 %v563, 1.0
    %v565 = vmul.f32 %v564, %v487
    %v566 = vand.u32 2147483647, %v487
    %vm567 = vcmp.lt.f32.partialorder %v566, 0.0004427343
    %v568 = vsel %vm567, %v565, %v562
    %v569 = vadd.f32 %v489, 1.0
    %v570 = vlog2.pop %v569
    %v571 = vmul.f32 %v570, 0.6931472
    %v572 = vmul.f32 -0.5, %v489
    %v573 = vadd.f32 %v572, 1.0
    %v574 = vmul.f32 %v573, %v489
    %v575 = vand.u32 2147483647, %v489
    %vm576 = vcmp.lt.f32.partialorder %v575, 0.0004427343
    %v577 = vsel %vm576, %v574, %v571
    %v578 = vadd.f32 %v491, 1.0
    %v579 = vlog2.pop %v578
    %v580 = vmul.f32 %v579, 0.6931472
    %v581 = vmul.f32 -0.5, %v491
    %v582 = vadd.f32 %v581, 1.0
    %v583 = vmul.f32 %v582, %v491
    %v584 = vand.u32 2147483647, %v491
    %vm585 = vcmp.lt.f32.partialorder %v584, 0.0004427343
    %v586 = vsel %vm585, %v583, %v580
    %v587 = vadd.f32 %v493, 1.0
    %v588 = vlog2.pop %v587
    %v589 = vmul.f32 %v588, 0.6931472
    %v590 = vmul.f32 -0.5, %v493
    %v591 = vadd.f32 %v590, 1.0
    %v592 = vmul.f32 %v591, %v493
    %v593 = vand.u32 2147483647, %v493
    %vm594 = vcmp.lt.f32.partialorder %v593, 0.0004427343
    %v595 = vsel %vm594, %v592, %v589
    %v596 = vadd.f32 %v495, 1.0
    %v597 = vlog2.pop %v596
    %v598 = vmul.f32 %v597, 0.6931472
    %v599 = vmul.f32 -0.5, %v495
    %v600 = vadd.f32 %v599, 1.0
    %v601 = vmul.f32 %v600, %v495
    %v602 = vand.u32 2147483647, %v495
    %vm603 = vcmp.lt.f32.partialorder %v602, 0.0004427343
    %v604 = vsel %vm603, %v601, %v598
    %v605 = vadd.f32 %v497, 1.0
    %v606 = vlog2.pop %v605
    %v607 = vmul.f32 %v606, 0.6931472
    %v608 = vmul.f32 -0.5, %v497
    %v609 = vadd.f32 %v608, 1.0
    %v610 = vmul.f32 %v609, %v497
    %v611 = vand.u32 2147483647, %v497
    %vm612 = vcmp.lt.f32.partialorder %v611, 0.0004427343
    %v613 = vsel %vm612, %v610, %v607
    %v614 = vadd.f32 %v499, 1.0
    %v615 = vlog2.pop %v614
    %v616 = vmul.f32 %v615, 0.6931472
    %v617 = vmul.f32 -0.5, %v499
    %v618 = vadd.f32 %v617, 1.0
    %v619 = vmul.f32 %v618, %v499
    %v620 = vand.u32 2147483647, %v499
    %vm621 = vcmp.lt.f32.partialorder %v620, 0.0004427343
    %v622 = vsel %vm621, %v619, %v616
    %v623 = vadd.f32 %v501, 1.0
    %v624 = vlog2.pop %v623
    %v625 = vmul.f32 %v624, 0.6931472
    %v626 = vmul.f32 -0.5, %v501
    %v627 = vadd.f32 %v626, 1.0
    %v628 = vmul.f32 %v627, %v501
    %v629 = vand.u32 2147483647, %v501
    %vm630 = vcmp.lt.f32.partialorder %v629, 0.0004427343
    %v631 = vsel %vm630, %v628, %v625
    %v632 = vadd.f32 %v503, 1.0
    %v633 = vlog2.pop %v632
    %v634 = vmul.f32 %v633, 0.6931472
    %v635 = vmul.f32 -0.5, %v503
    %v636 = vadd.f32 %v635, 1.0
    %v637 = vmul.f32 %v636, %v503
    %v638 = vand.u32 2147483647, %v503
    %vm639 = vcmp.lt.f32.partialorder %v638, 0.0004427343
    %v640 = vsel %vm639, %v637, %v634
    %v641 = vadd.f32 %v505, 1.0
    %v642 = vlog2.pop %v641
    %v643 = vmul.f32 %v642, 0.6931472
    %v644 = vmul.f32 -0.5, %v505
    %v645 = vadd.f32 %v644, 1.0
    %v646 = vmul.f32 %v645, %v505
    %v647 = vand.u32 2147483647, %v505
    %vm648 = vcmp.lt.f32.partialorder %v647, 0.0004427343
    %v649 = vsel %vm648, %v646, %v643
    %v650 = vsel %vm458, %v442, %v514
    %v651 = vsel %vm459, %v443, %v523
    %v652 = vsel %vm460, %v444, %v532
    %v653 = vsel %vm461, %v445, %v541
    %v654 = vsel %vm462, %v446, %v550
    %v655 = vsel %vm463, %v447, %v559
    %v656 = vsel %vm464, %v448, %v568
    %v657 = vsel %vm465, %v449, %v577
    %v658 = vsel %vm466, %v450, %v586
    %v659 = vsel %vm467, %v451, %v595
    %v660 = vsel %vm468, %v452, %v604
    %v661 = vsel %vm469, %v453, %v613
    %v662 = vsel %vm470, %v454, %v622
    %v663 = vsel %vm471, %v455, %v631
    %v664 = vsel %vm472, %v456, %v640
    %v665 = vsel %vm473, %v457, %v649
    %v666 = vpack.c.bf16 %v651, %v650
    %v667 = vpack.c.bf16 %v653, %v652
    %v668 = vpack.c.bf16 %v655, %v654
    %v669 = vpack.c.bf16 %v657, %v656
    %v670 = vpack.c.bf16 %v659, %v658
    %v671 = vpack.c.bf16 %v661, %v660
    %v672 = vpack.c.bf16 %v663, %v662
    %v673 = vpack.c.bf16 %v665, %v664
    %v674 = vlaneseq
    %v675 = vshrl.u32 %v674, 7
    %v676 = vsub.s32 0, %v675
    %v677 = vrot.slane %v47, %v676
    %v694 = vunpack.c.l.b16 %v29
    %v695 = vunpack.c.l.b16 %v30
    %v696 = vunpack.c.l.b16 %v31
    %v697 = vunpack.c.l.b16 %v32
    %v698 = vunpack.c.l.b16 %v33
    %v699 = vunpack.c.l.b16 %v34
    %v700 = vunpack.c.l.b16 %v35
    %v701 = vunpack.c.l.b16 %v36
    %v702 = vunpack.c.l.b16 %v37
    %v703 = vunpack.c.l.b16 %v38
    %v704 = vunpack.c.l.b16 %v39
    %v705 = vunpack.c.l.b16 %v40
    %v706 = vunpack.c.l.b16 %v41
    %v707 = vunpack.c.l.b16 %v42
    %v708 = vunpack.c.l.b16 %v43
    %v709 = vunpack.c.l.b16 %v44
    %v710 = vpack.c.b16 %v695, %v694
    %v711 = vpack.c.b16 %v697, %v696
    %v712 = vpack.c.b16 %v699, %v698
    %v713 = vpack.c.b16 %v701, %v700
    %v714 = vpack.c.b16 %v703, %v702
    %v715 = vpack.c.b16 %v705, %v704
    %v716 = vpack.c.b16 %v707, %v706
    %v717 = vpack.c.b16 %v709, %v708
    %726 = vmatprep.subr.bf16.mxu0 0
    %727 = vmatpush1.bf16.msra.mxu0 %v710
    %728 = vmatprep.subr.bf16.mxu0 0
    %729 = vmatpush1.bf16.msra.mxu0 %v711
    %730 = vmatprep.subr.bf16.mxu0 0
    %731 = vmatpush1.bf16.msra.mxu0 %v712
    %732 = vmatprep.subr.bf16.mxu0 0
    %733 = vmatpush1.bf16.msra.mxu0 %v713
    %734 = vmatprep.subr.bf16.mxu0 0
    %735 = vmatpush1.bf16.msra.mxu0 %v714
    %736 = vmatprep.subr.bf16.mxu0 0
    %737 = vmatpush1.bf16.msra.mxu0 %v715
    %738 = vmatprep.subr.bf16.mxu0 0
    %739 = vmatpush1.bf16.msra.mxu0 %v716
    %740 = vmatprep.subr.bf16.mxu0 0
    %741 = vmatpush1.bf16.msra.mxu0 %v717
    %742 = vmatprep.subr.bf16.mxu0 0
    %743 = vmatpush1.bf16.msra.mxu0 0
    %744 = vmatprep.subr.bf16.mxu0 0
    %745 = vmatpush1.bf16.msra.mxu0 0
    %746 = vmatprep.subr.bf16.mxu0 0
    %747 = vmatpush1.bf16.msra.mxu0 0
    %748 = vmatprep.subr.bf16.mxu0 0
    %749 = vmatpush1.bf16.msra.mxu0 0
    %750 = vmatprep.subr.bf16.mxu0 0
    %751 = vmatpush1.bf16.msra.mxu0 0
    %752 = vmatprep.subr.bf16.mxu0 0
    %753 = vmatpush1.bf16.msra.mxu0 0
    %754 = vmatprep.subr.bf16.mxu0 0
    %755 = vmatpush1.bf16.msra.mxu0 0
    %756 = vmatprep.subr.bf16.mxu0 0
    %757 = vmatpush1.bf16.msra.mxu0 0
    %758 = vmatprep.mubr.bf16.mxu0 0
    %759 = vmatmul.mubr.bf16.gmra.mrb[0].mxu0 %v666
    %v760 = vpop.f32.mrb[0].mxu0
    %v761 = vadd.f32 %v677, %v760
    %v762 = vpop.f32.mrb[0].mxu0
    %v763 = vpop.f32.mrb[0].mxu0
    %v764 = vadd.f32 %v677, %v763
    %v765 = vpop.f32.mrb[0].mxu0
    %766 = vmatprep.mubr.bf16.mxu0 0
    %767 = vmatmul.mubr.bf16.gmra.mrb[0].mxu0 %v667
    %v768 = vpop.f32.mrb[0].mxu0
    %v769 = vadd.f32 %v677, %v768
    %v770 = vpop.f32.mrb[0].mxu0
    %v771 = vpop.f32.mrb[0].mxu0
    %v772 = vadd.f32 %v677, %v771
    %v773 = vpop.f32.mrb[0].mxu0
    %774 = vmatprep.mubr.bf16.mxu0 0
    %775 = vmatmul.mubr.bf16.gmra.mrb[0].mxu0 %v668
    %v776 = vpop.f32.mrb[0].mxu0
    %v777 = vadd.f32 %v677, %v776
    %v778 = vpop.f32.mrb[0].mxu0
    %v779 = vpop.f32.mrb[0].mxu0
    %v780 = vadd.f32 %v677, %v779
    %v781 = vpop.f32.mrb[0].mxu0
    %782 = vmatprep.mubr.bf16.mxu0 0
    %783 = vmatmul.mubr.bf16.gmra.mrb[0].mxu0 %v669
    %v784 = vpop.f32.mrb[0].mxu0
    %v785 = vadd.f32 %v677, %v784
    %v786 = vpop.f32.mrb[0].mxu0
    %v787 = vpop.f32.mrb[0].mxu0
    %v788 = vadd.f32 %v677, %v787
    %v789 = vpop.f32.mrb[0].mxu0
    %790 = vmatprep.mubr.bf16.mxu0 0
    %791 = vmatmul.mubr.bf16.gmra.mrb[0].mxu0 %v670
    %v792 = vpop.f32.mrb[0].mxu0
    %v793 = vadd.f32 %v677, %v792
    %v794 = vpop.f32.mrb[0].mxu0
    %v795 = vpop.f32.mrb[0].mxu0
    %v796 = vadd.f32 %v677, %v795
    %v797 = vpop.f32.mrb[0].mxu0
    %798 = vmatprep.mubr.bf16.mxu0 0
    %799 = vmatmul.mubr.bf16.gmra.mrb[0].mxu0 %v671
    %v800 = vpop.f32.mrb[0].mxu0
    %v801 = vadd.f32 %v677, %v800
    %v802 = vpop.f32.mrb[0].mxu0
    %v803 = vpop.f32.mrb[0].mxu0
    %v804 = vadd.f32 %v677, %v803
    %v805 = vpop.f32.mrb[0].mxu0
    %806 = vmatprep.mubr.bf16.mxu0 0
    %807 = vmatmul.mubr.bf16.gmra.mrb[0].mxu0 %v672
    %v808 = vpop.f32.mrb[0].mxu0
    %v809 = vadd.f32 %v677, %v808
    %v810 = vpop.f32.mrb[0].mxu0
    %v811 = vpop.f32.mrb[0].mxu0
    %v812 = vadd.f32 %v677, %v811
    %v813 = vpop.f32.mrb[0].mxu0
    %814 = vmatprep.mubr.bf16.mxu0 0
    %815 = vmatmul.mubr.bf16.gmra.mrb[0].mxu0 %v673
    %v816 = vpop.f32.mrb[0].mxu0
    %v817 = vadd.f32 %v677, %v816
    %v818 = vpop.f32.mrb[0].mxu0
    %v819 = vpop.f32.mrb[0].mxu0
    %v820 = vadd.f32 %v677, %v819
    %v821 = vpop.f32.mrb[0].mxu0
    %822 = vdwg.mxu0
    %vm823 = vcmask 523264
    %v824 = vsel %vm823, %v761, 0.0
    %825 = vadd.xlane.f32.xlu0 %v824
    %v826 = vpop.xlane.xlu0 %825
    %v827 = vsel %vm823, %v764, 0.0
    %828 = vadd.xlane.f32.xlu0 %v827
    %v829 = vpop.xlane.xlu0 %828
    %v830 = vsel %vm823, %v769, 0.0
    %831 = vadd.xlane.f32.xlu0 %v830
    %v832 = vpop.xlane.xlu0 %831
    %v833 = vsel %vm823, %v772, 0.0
    %834 = vadd.xlane.f32.xlu0 %v833
    %v835 = vpop.xlane.xlu0 %834
    %v836 = vsel %vm823, %v777, 0.0
    %837 = vadd.xlane.f32.xlu0 %v836
    %v838 = vpop.xlane.xlu0 %837
    %v839 = vsel %vm823, %v780, 0.0
    %840 = vadd.xlane.f32.xlu0 %v839
    %v841 = vpop.xlane.xlu0 %840
    %v842 = vsel %vm823, %v785, 0.0
    %843 = vadd.xlane.f32.xlu0 %v842
    %v844 = vpop.xlane.xlu0 %843
    %v845 = vsel %vm823, %v788, 0.0
    %846 = vadd.xlane.f32.xlu0 %v845
    %v847 = vpop.xlane.xlu0 %846
    %v848 = vsel %vm823, %v793, 0.0
    %849 = vadd.xlane.f32.xlu0 %v848
    %v850 = vpop.xlane.xlu0 %849
    %v851 = vsel %vm823, %v796, 0.0
    %852 = vadd.xlane.f32.xlu0 %v851
    %v853 = vpop.xlane.xlu0 %852
    %v854 = vsel %vm823, %v801, 0.0
    %855 = vadd.xlane.f32.xlu0 %v854
    %v856 = vpop.xlane.xlu0 %855
    %v857 = vsel %vm823, %v804, 0.0
    %858 = vadd.xlane.f32.xlu0 %v857
    %v859 = vpop.xlane.xlu0 %858
    %v860 = vsel %vm823, %v809, 0.0
    %861 = vadd.xlane.f32.xlu0 %v860
    %v862 = vpop.xlane.xlu0 %861
    %v863 = vsel %vm823, %v812, 0.0
    %864 = vadd.xlane.f32.xlu0 %v863
    %v865 = vpop.xlane.xlu0 %864
    %v866 = vsel %vm823, %v817, 0.0
    %867 = vadd.xlane.f32.xlu0 %v866
    %v868 = vpop.xlane.xlu0 %867
    %v869 = vsel %vm823, %v820, 0.0
    %870 = vadd.xlane.f32.xlu0 %v869
    %v871 = vpop.xlane.xlu0 %870
    %v872 = vmul.f32 %v761, %v761
    %v873 = vmul.f32 %v764, %v764
    %v874 = vmul.f32 %v769, %v769
    %v875 = vmul.f32 %v772, %v772
    %v876 = vmul.f32 %v777, %v777
    %v877 = vmul.f32 %v780, %v780
    %v878 = vmul.f32 %v785, %v785
    %v879 = vmul.f32 %v788, %v788
    %v880 = vmul.f32 %v793, %v793
    %v881 = vmul.f32 %v796, %v796
    %v882 = vmul.f32 %v801, %v801
    %v883 = vmul.f32 %v804, %v804
    %v884 = vmul.f32 %v809, %v809
    %v885 = vmul.f32 %v812, %v812
    %v886 = vmul.f32 %v817, %v817
    %v887 = vmul.f32 %v820, %v820
    %v888 = vsel %vm823, %v872, 0.0
    %889 = vadd.xlane.f32.xlu0 %v888
    %v890 = vpop.xlane.xlu0 %889
    %v891 = vsel %vm823, %v873, 0.0
    %892 = vadd.xlane.f32.xlu0 %v891
    %v893 = vpop.xlane.xlu0 %892
    %v894 = vsel %vm823, %v874, 0.0
    %895 = vadd.xlane.f32.xlu0 %v894
    %v896 = vpop.xlane.xlu0 %895
    %v897 = vsel %vm823, %v875, 0.0
    %898 = vadd.xlane.f32.xlu0 %v897
    %v899 = vpop.xlane.xlu0 %898
    %v900 = vsel %vm823, %v876, 0.0
    %901 = vadd.xlane.f32.xlu0 %v900
    %v902 = vpop.xlane.xlu0 %901
    %v903 = vsel %vm823, %v877, 0.0
    %904 = vadd.xlane.f32.xlu0 %v903
    %v905 = vpop.xlane.xlu0 %904
    %v906 = vsel %vm823, %v878, 0.0
    %907 = vadd.xlane.f32.xlu0 %v906
    %v908 = vpop.xlane.xlu0 %907
    %v909 = vsel %vm823, %v879, 0.0
    %910 = vadd.xlane.f32.xlu0 %v909
    %v911 = vpop.xlane.xlu0 %910
    %v912 = vsel %vm823, %v880, 0.0
    %913 = vadd.xlane.f32.xlu0 %v912
    %v914 = vpop.xlane.xlu0 %913
    %v915 = vsel %vm823, %v881, 0.0
    %916 = vadd.xlane.f32.xlu0 %v915
    %v917 = vpop.xlane.xlu0 %916
    %v918 = vsel %vm823, %v882, 0.0
    %919 = vadd.xlane.f32.xlu0 %v918
    %v920 = vpop.xlane.xlu0 %919
    %v921 = vsel %vm823, %v883, 0.0
    %922 = vadd.xlane.f32.xlu0 %v921
    %v923 = vpop.xlane.xlu0 %922
    %v924 = vsel %vm823, %v884, 0.0
    %925 = vadd.xlane.f32.xlu0 %v924
    %v926 = vpop.xlane.xlu0 %925
    %v927 = vsel %vm823, %v885, 0.0
    %928 = vadd.xlane.f32.xlu0 %v927
    %v929 = vpop.xlane.xlu0 %928
    %v930 = vsel %vm823, %v886, 0.0
    %931 = vadd.xlane.f32.xlu0 %v930
    %v932 = vpop.xlane.xlu0 %931
    %v933 = vsel %vm823, %v887, 0.0
    %934 = vadd.xlane.f32.xlu0 %v933
    %v935 = vpop.xlane.xlu0 %934
    %v936 = vmul.f32 %v826, 0.015625
    %v937 = vmul.f32 %v829, 0.015625
    %v938 = vmul.f32 %v832, 0.015625
    %v939 = vmul.f32 %v835, 0.015625
    %v940 = vmul.f32 %v838, 0.015625
    %v941 = vmul.f32 %v841, 0.015625
    %v942 = vmul.f32 %v844, 0.015625
    %v943 = vmul.f32 %v847, 0.015625
    %v944 = vmul.f32 %v850, 0.015625
    %v945 = vmul.f32 %v853, 0.015625
    %v946 = vmul.f32 %v856, 0.015625
    %v947 = vmul.f32 %v859, 0.015625
    %v948 = vmul.f32 %v862, 0.015625
    %v949 = vmul.f32 %v865, 0.015625
    %v950 = vmul.f32 %v868, 0.015625
    %v951 = vmul.f32 %v871, 0.015625
    %v952 = vmul.f32 %v890, 0.015625
    %v953 = vmul.f32 %v893, 0.015625
    %v954 = vmul.f32 %v896, 0.015625
    %v955 = vmul.f32 %v899, 0.015625
    %v956 = vmul.f32 %v902, 0.015625
    %v957 = vmul.f32 %v905, 0.015625
    %v958 = vmul.f32 %v908, 0.015625
    %v959 = vmul.f32 %v911, 0.015625
    %v960 = vmul.f32 %v914, 0.015625
    %v961 = vmul.f32 %v917, 0.015625
    %v962 = vmul.f32 %v920, 0.015625
    %v963 = vmul.f32 %v923, 0.015625
    %v964 = vmul.f32 %v926, 0.015625
    %v965 = vmul.f32 %v929, 0.015625
    %v966 = vmul.f32 %v932, 0.015625
    %v967 = vmul.f32 %v935, 0.015625
    %v968 = vmul.f32 %v936, %v936
    %v969 = vmul.f32 %v937, %v937
    %v970 = vmul.f32 %v938, %v938
    %v971 = vmul.f32 %v939, %v939
    %v972 = vmul.f32 %v940, %v940
    %v973 = vmul.f32 %v941, %v941
    %v974 = vmul.f32 %v942, %v942
    %v975 = vmul.f32 %v943, %v943
    %v976 = vmul.f32 %v944, %v944
    %v977 = vmul.f32 %v945, %v945
    %v978 = vmul.f32 %v946, %v946
    %v979 = vmul.f32 %v947, %v947
    %v980 = vmul.f32 %v948, %v948
    %v981 = vmul.f32 %v949, %v949
    %v982 = vmul.f32 %v950, %v950
    %v983 = vmul.f32 %v951, %v951
    %v984 = vsub.f32 %v952, %v968
    %v985 = vsub.f32 %v953, %v969
    %v986 = vsub.f32 %v954, %v970
    %v987 = vsub.f32 %v955, %v971
    %v988 = vsub.f32 %v956, %v972
    %v989 = vsub.f32 %v957, %v973
    %v990 = vsub.f32 %v958, %v974
    %v991 = vsub.f32 %v959, %v975
    %v992 = vsub.f32 %v960, %v976
    %v993 = vsub.f32 %v961, %v977
    %v994 = vsub.f32 %v962, %v978
    %v995 = vsub.f32 %v963, %v979
    %v996 = vsub.f32 %v964, %v980
    %v997 = vsub.f32 %v965, %v981
    %v998 = vsub.f32 %v966, %v982
    %v999 = vsub.f32 %v967, %v983
    %v1000 = vadd.f32 %v984, 1e-05
    %v1001 = vadd.f32 %v985, 1e-05
    %v1002 = vadd.f32 %v986, 1e-05
    %v1003 = vadd.f32 %v987, 1e-05
    %v1004 = vadd.f32 %v988, 1e-05
    %v1005 = vadd.f32 %v989, 1e-05
    %v1006 = vadd.f32 %v990, 1e-05
    %v1007 = vadd.f32 %v991, 1e-05
    %v1008 = vadd.f32 %v992, 1e-05
    %v1009 = vadd.f32 %v993, 1e-05
    %v1010 = vadd.f32 %v994, 1e-05
    %v1011 = vadd.f32 %v995, 1e-05
    %v1012 = vadd.f32 %v996, 1e-05
    %v1013 = vadd.f32 %v997, 1e-05
    %v1014 = vadd.f32 %v998, 1e-05
    %v1015 = vadd.f32 %v999, 1e-05
    %v1016 = vrsqrt.pop %v1000
    %v1017 = vrsqrt.pop %v1001
    %v1018 = vrsqrt.pop %v1002
    %v1019 = vrsqrt.pop %v1003
    %v1020 = vrsqrt.pop %v1004
    %v1021 = vrsqrt.pop %v1005
    %v1022 = vrsqrt.pop %v1006
    %v1023 = vrsqrt.pop %v1007
    %v1024 = vrsqrt.pop %v1008
    %v1025 = vrsqrt.pop %v1009
    %v1026 = vrsqrt.pop %v1010
    %v1027 = vrsqrt.pop %v1011
    %v1028 = vrsqrt.pop %v1012
    %v1029 = vrsqrt.pop %v1013
    %v1030 = vrsqrt.pop %v1014
    %v1031 = vrsqrt.pop %v1015
    %v1032 = vlaneseq
    %v1033 = vshrl.u32 %v1032, 7
    %v1034 = vsub.s32 1, %v1033
    %v1035 = vrot.slane %v47, %v1034
    %v1036 = vmul.f32 %v1016, %v1035
    %v1037 = vmul.f32 %v1017, %v1035
    %v1038 = vmul.f32 %v1018, %v1035
    %v1039 = vmul.f32 %v1019, %v1035
    %v1040 = vmul.f32 %v1020, %v1035
    %v1041 = vmul.f32 %v1021, %v1035
    %v1042 = vmul.f32 %v1022, %v1035
    %v1043 = vmul.f32 %v1023, %v1035
    %v1044 = vmul.f32 %v1024, %v1035
    %v1045 = vmul.f32 %v1025, %v1035
    %v1046 = vmul.f32 %v1026, %v1035
    %v1047 = vmul.f32 %v1027, %v1035
    %v1048 = vmul.f32 %v1028, %v1035
    %v1049 = vmul.f32 %v1029, %v1035
    %v1050 = vmul.f32 %v1030, %v1035
    %v1051 = vmul.f32 %v1031, %v1035
    %v1052 = vsub.f32 %v761, %v936
    %v1053 = vsub.f32 %v764, %v937
    %v1054 = vsub.f32 %v769, %v938
    %v1055 = vsub.f32 %v772, %v939
    %v1056 = vsub.f32 %v777, %v940
    %v1057 = vsub.f32 %v780, %v941
    %v1058 = vsub.f32 %v785, %v942
    %v1059 = vsub.f32 %v788, %v943
    %v1060 = vsub.f32 %v793, %v944
    %v1061 = vsub.f32 %v796, %v945
    %v1062 = vsub.f32 %v801, %v946
    %v1063 = vsub.f32 %v804, %v947
    %v1064 = vsub.f32 %v809, %v948
    %v1065 = vsub.f32 %v812, %v949
    %v1066 = vsub.f32 %v817, %v950
    %v1067 = vsub.f32 %v820, %v951
    %v1068 = vmul.f32 %v1052, %v1036
    %v1069 = vmul.f32 %v1053, %v1037
    %v1070 = vmul.f32 %v1054, %v1038
    %v1071 = vmul.f32 %v1055, %v1039
    %v1072 = vmul.f32 %v1056, %v1040
    %v1073 = vmul.f32 %v1057, %v1041
    %v1074 = vmul.f32 %v1058, %v1042
    %v1075 = vmul.f32 %v1059, %v1043
    %v1076 = vmul.f32 %v1060, %v1044
    %v1077 = vmul.f32 %v1061, %v1045
    %v1078 = vmul.f32 %v1062, %v1046
    %v1079 = vmul.f32 %v1063, %v1047
    %v1080 = vmul.f32 %v1064, %v1048
    %v1081 = vmul.f32 %v1065, %v1049
    %v1082 = vmul.f32 %v1066, %v1050
    %v1083 = vmul.f32 %v1067, %v1051
    %v1084 = vlaneseq
    %v1085 = vshrl.u32 %v1084, 7
    %v1086 = vsub.s32 2, %v1085
    %v1087 = vrot.slane %v47, %v1086
    %v1088 = vadd.f32 %v1068, %v1087
    %v1089 = vadd.f32 %v1069, %v1087
    %v1090 = vadd.f32 %v1070, %v1087
    %v1091 = vadd.f32 %v1071, %v1087
    %v1092 = vadd.f32 %v1072, %v1087
    %v1093 = vadd.f32 %v1073, %v1087
    %v1094 = vadd.f32 %v1074, %v1087
    %v1095 = vadd.f32 %v1075, %v1087
    %v1096 = vadd.f32 %v1076, %v1087
    %v1097 = vadd.f32 %v1077, %v1087
    %v1098 = vadd.f32 %v1078, %v1087
    %v1099 = vadd.f32 %v1079, %v1087
    %v1100 = vadd.f32 %v1080, %v1087
    %v1101 = vadd.f32 %v1081, %v1087
    %v1102 = vadd.f32 %v1082, %v1087
    %v1103 = vadd.f32 %v1083, %v1087
    %vm1104 = vcmp.gt.f32.partialorder %v1088, 20.0
    %vm1105 = vcmp.gt.f32.partialorder %v1089, 20.0
    %vm1106 = vcmp.gt.f32.partialorder %v1090, 20.0
    %vm1107 = vcmp.gt.f32.partialorder %v1091, 20.0
    %vm1108 = vcmp.gt.f32.partialorder %v1092, 20.0
    %vm1109 = vcmp.gt.f32.partialorder %v1093, 20.0
    %vm1110 = vcmp.gt.f32.partialorder %v1094, 20.0
    %vm1111 = vcmp.gt.f32.partialorder %v1095, 20.0
    %vm1112 = vcmp.gt.f32.partialorder %v1096, 20.0
    %vm1113 = vcmp.gt.f32.partialorder %v1097, 20.0
    %vm1114 = vcmp.gt.f32.partialorder %v1098, 20.0
    %vm1115 = vcmp.gt.f32.partialorder %v1099, 20.0
    %vm1116 = vcmp.gt.f32.partialorder %v1100, 20.0
    %vm1117 = vcmp.gt.f32.partialorder %v1101, 20.0
    %vm1118 = vcmp.gt.f32.partialorder %v1102, 20.0
    %vm1119 = vcmp.gt.f32.partialorder %v1103, 20.0
    %v1120 = vmul.f32 %v1088, 1.442695
    %v1121 = vpow.pop %v1120
    %v1122 = vmul.f32 %v1089, 1.442695
    %v1123 = vpow.pop %v1122
    %v1124 = vmul.f32 %v1090, 1.442695
    %v1125 = vpow.pop %v1124
    %v1126 = vmul.f32 %v1091, 1.442695
    %v1127 = vpow.pop %v1126
    %v1128 = vmul.f32 %v1092, 1.442695
    %v1129 = vpow.pop %v1128
    %v1130 = vmul.f32 %v1093, 1.442695
    %v1131 = vpow.pop %v1130
    %v1132 = vmul.f32 %v1094, 1.442695
    %v1133 = vpow.pop %v1132
    %v1134 = vmul.f32 %v1095, 1.442695
    %v1135 = vpow.pop %v1134
    %v1136 = vmul.f32 %v1096, 1.442695
    %v1137 = vpow.pop %v1136
    %v1138 = vmul.f32 %v1097, 1.442695
    %v1139 = vpow.pop %v1138
    %v1140 = vmul.f32 %v1098, 1.442695
    %v1141 = vpow.pop %v1140
    %v1142 = vmul.f32 %v1099, 1.442695
    %v1143 = vpow.pop %v1142
    %v1144 = vmul.f32 %v1100, 1.442695
    %v1145 = vpow.pop %v1144
    %v1146 = vmul.f32 %v1101, 1.442695
    %v1147 = vpow.pop %v1146
    %v1148 = vmul.f32 %v1102, 1.442695
    %v1149 = vpow.pop %v1148
    %v1150 = vmul.f32 %v1103, 1.442695
    %v1151 = vpow.pop %v1150
    %v1152 = vadd.f32 %v1121, 1.0
    %v1153 = vlog2.pop %v1152
    %v1154 = vmul.f32 %v1153, 0.6931472
    %v1155 = vmul.f32 -0.5, %v1121
    %v1156 = vadd.f32 %v1155, 1.0
    %v1157 = vmul.f32 %v1156, %v1121
    %v1158 = vand.u32 2147483647, %v1121
    %vm1159 = vcmp.lt.f32.partialorder %v1158, 0.0004427343
    %v1160 = vsel %vm1159, %v1157, %v1154
    %v1161 = vadd.f32 %v1123, 1.0
    %v1162 = vlog2.pop %v1161
    %v1163 = vmul.f32 %v1162, 0.6931472
    %v1164 = vmul.f32 -0.5, %v1123
    %v1165 = vadd.f32 %v1164, 1.0
    %v1166 = vmul.f32 %v1165, %v1123
    %v1167 = vand.u32 2147483647, %v1123
    %vm1168 = vcmp.lt.f32.partialorder %v1167, 0.0004427343
    %v1169 = vsel %vm1168, %v1166, %v1163
    %v1170 = vadd.f32 %v1125, 1.0
    %v1171 = vlog2.pop %v1170
    %v1172 = vmul.f32 %v1171, 0.6931472
    %v1173 = vmul.f32 -0.5, %v1125
    %v1174 = vadd.f32 %v1173, 1.0
    %v1175 = vmul.f32 %v1174, %v1125
    %v1176 = vand.u32 2147483647, %v1125
    %vm1177 = vcmp.lt.f32.partialorder %v1176, 0.0004427343
    %v1178 = vsel %vm1177, %v1175, %v1172
    %v1179 = vadd.f32 %v1127, 1.0
    %v1180 = vlog2.pop %v1179
    %v1181 = vmul.f32 %v1180, 0.6931472
    %v1182 = vmul.f32 -0.5, %v1127
    %v1183 = vadd.f32 %v1182, 1.0
    %v1184 = vmul.f32 %v1183, %v1127
    %v1185 = vand.u32 2147483647, %v1127
    %vm1186 = vcmp.lt.f32.partialorder %v1185, 0.0004427343
    %v1187 = vsel %vm1186, %v1184, %v1181
    %v1188 = vadd.f32 %v1129, 1.0
    %v1189 = vlog2.pop %v1188
    %v1190 = vmul.f32 %v1189, 0.6931472
    %v1191 = vmul.f32 -0.5, %v1129
    %v1192 = vadd.f32 %v1191, 1.0
    %v1193 = vmul.f32 %v1192, %v1129
    %v1194 = vand.u32 2147483647, %v1129
    %vm1195 = vcmp.lt.f32.partialorder %v1194, 0.0004427343
    %v1196 = vsel %vm1195, %v1193, %v1190
    %v1197 = vadd.f32 %v1131, 1.0
    %v1198 = vlog2.pop %v1197
    %v1199 = vmul.f32 %v1198, 0.6931472
    %v1200 = vmul.f32 -0.5, %v1131
    %v1201 = vadd.f32 %v1200, 1.0
    %v1202 = vmul.f32 %v1201, %v1131
    %v1203 = vand.u32 2147483647, %v1131
    %vm1204 = vcmp.lt.f32.partialorder %v1203, 0.0004427343
    %v1205 = vsel %vm1204, %v1202, %v1199
    %v1206 = vadd.f32 %v1133, 1.0
    %v1207 = vlog2.pop %v1206
    %v1208 = vmul.f32 %v1207, 0.6931472
    %v1209 = vmul.f32 -0.5, %v1133
    %v1210 = vadd.f32 %v1209, 1.0
    %v1211 = vmul.f32 %v1210, %v1133
    %v1212 = vand.u32 2147483647, %v1133
    %vm1213 = vcmp.lt.f32.partialorder %v1212, 0.0004427343
    %v1214 = vsel %vm1213, %v1211, %v1208
    %v1215 = vadd.f32 %v1135, 1.0
    %v1216 = vlog2.pop %v1215
    %v1217 = vmul.f32 %v1216, 0.6931472
    %v1218 = vmul.f32 -0.5, %v1135
    %v1219 = vadd.f32 %v1218, 1.0
    %v1220 = vmul.f32 %v1219, %v1135
    %v1221 = vand.u32 2147483647, %v1135
    %vm1222 = vcmp.lt.f32.partialorder %v1221, 0.0004427343
    %v1223 = vsel %vm1222, %v1220, %v1217
    %v1224 = vadd.f32 %v1137, 1.0
    %v1225 = vlog2.pop %v1224
    %v1226 = vmul.f32 %v1225, 0.6931472
    %v1227 = vmul.f32 -0.5, %v1137
    %v1228 = vadd.f32 %v1227, 1.0
    %v1229 = vmul.f32 %v1228, %v1137
    %v1230 = vand.u32 2147483647, %v1137
    %vm1231 = vcmp.lt.f32.partialorder %v1230, 0.0004427343
    %v1232 = vsel %vm1231, %v1229, %v1226
    %v1233 = vadd.f32 %v1139, 1.0
    %v1234 = vlog2.pop %v1233
    %v1235 = vmul.f32 %v1234, 0.6931472
    %v1236 = vmul.f32 -0.5, %v1139
    %v1237 = vadd.f32 %v1236, 1.0
    %v1238 = vmul.f32 %v1237, %v1139
    %v1239 = vand.u32 2147483647, %v1139
    %vm1240 = vcmp.lt.f32.partialorder %v1239, 0.0004427343
    %v1241 = vsel %vm1240, %v1238, %v1235
    %v1242 = vadd.f32 %v1141, 1.0
    %v1243 = vlog2.pop %v1242
    %v1244 = vmul.f32 %v1243, 0.6931472
    %v1245 = vmul.f32 -0.5, %v1141
    %v1246 = vadd.f32 %v1245, 1.0
    %v1247 = vmul.f32 %v1246, %v1141
    %v1248 = vand.u32 2147483647, %v1141
    %vm1249 = vcmp.lt.f32.partialorder %v1248, 0.0004427343
    %v1250 = vsel %vm1249, %v1247, %v1244
    %v1251 = vadd.f32 %v1143, 1.0
    %v1252 = vlog2.pop %v1251
    %v1253 = vmul.f32 %v1252, 0.6931472
    %v1254 = vmul.f32 -0.5, %v1143
    %v1255 = vadd.f32 %v1254, 1.0
    %v1256 = vmul.f32 %v1255, %v1143
    %v1257 = vand.u32 2147483647, %v1143
    %vm1258 = vcmp.lt.f32.partialorder %v1257, 0.0004427343
    %v1259 = vsel %vm1258, %v1256, %v1253
    %v1260 = vadd.f32 %v1145, 1.0
    %v1261 = vlog2.pop %v1260
    %v1262 = vmul.f32 %v1261, 0.6931472
    %v1263 = vmul.f32 -0.5, %v1145
    %v1264 = vadd.f32 %v1263, 1.0
    %v1265 = vmul.f32 %v1264, %v1145
    %v1266 = vand.u32 2147483647, %v1145
    %vm1267 = vcmp.lt.f32.partialorder %v1266, 0.0004427343
    %v1268 = vsel %vm1267, %v1265, %v1262
    %v1269 = vadd.f32 %v1147, 1.0
    %v1270 = vlog2.pop %v1269
    %v1271 = vmul.f32 %v1270, 0.6931472
    %v1272 = vmul.f32 -0.5, %v1147
    %v1273 = vadd.f32 %v1272, 1.0
    %v1274 = vmul.f32 %v1273, %v1147
    %v1275 = vand.u32 2147483647, %v1147
    %vm1276 = vcmp.lt.f32.partialorder %v1275, 0.0004427343
    %v1277 = vsel %vm1276, %v1274, %v1271
    %v1278 = vadd.f32 %v1149, 1.0
    %v1279 = vlog2.pop %v1278
    %v1280 = vmul.f32 %v1279, 0.6931472
    %v1281 = vmul.f32 -0.5, %v1149
    %v1282 = vadd.f32 %v1281, 1.0
    %v1283 = vmul.f32 %v1282, %v1149
    %v1284 = vand.u32 2147483647, %v1149
    %vm1285 = vcmp.lt.f32.partialorder %v1284, 0.0004427343
    %v1286 = vsel %vm1285, %v1283, %v1280
    %v1287 = vadd.f32 %v1151, 1.0
    %v1288 = vlog2.pop %v1287
    %v1289 = vmul.f32 %v1288, 0.6931472
    %v1290 = vmul.f32 -0.5, %v1151
    %v1291 = vadd.f32 %v1290, 1.0
    %v1292 = vmul.f32 %v1291, %v1151
    %v1293 = vand.u32 2147483647, %v1151
    %vm1294 = vcmp.lt.f32.partialorder %v1293, 0.0004427343
    %v1295 = vsel %vm1294, %v1292, %v1289
    %v1296 = vsel %vm1104, %v1088, %v1160
    %v1297 = vsel %vm1105, %v1089, %v1169
    %v1298 = vsel %vm1106, %v1090, %v1178
    %v1299 = vsel %vm1107, %v1091, %v1187
    %v1300 = vsel %vm1108, %v1092, %v1196
    %v1301 = vsel %vm1109, %v1093, %v1205
    %v1302 = vsel %vm1110, %v1094, %v1214
    %v1303 = vsel %vm1111, %v1095, %v1223
    %v1304 = vsel %vm1112, %v1096, %v1232
    %v1305 = vsel %vm1113, %v1097, %v1241
    %v1306 = vsel %vm1114, %v1098, %v1250
    %v1307 = vsel %vm1115, %v1099, %v1259
    %v1308 = vsel %vm1116, %v1100, %v1268
    %v1309 = vsel %vm1117, %v1101, %v1277
    %v1310 = vsel %vm1118, %v1102, %v1286
    %v1311 = vsel %vm1119, %v1103, %v1295
    %v1312 = vpack.c.bf16 %v1297, %v1296
    %v1313 = vpack.c.bf16 %v1299, %v1298
    %v1314 = vpack.c.bf16 %v1301, %v1300
    %v1315 = vpack.c.bf16 %v1303, %v1302
    %v1316 = vpack.c.bf16 %v1305, %v1304
    %v1317 = vpack.c.bf16 %v1307, %v1306
    %v1318 = vpack.c.bf16 %v1309, %v1308
    %v1319 = vpack.c.bf16 %v1311, %v1310
    %1321 = vset.pattern.permute.xlu0 0
    %1322 = vperm.xlu0 %1321, %v47
    %v1323 = vpop.permute.xlu0 %1322
    %v1324 = vrot.slane %v1323, 3
    %v1327 = vsel %vm823, %v45, 0
    %v1330 = vsel %vm823, %v1312, 0
    %v1333 = vsel %vm823, %v1313, 0
    %v1336 = vsel %vm823, %v1314, 0
    %v1339 = vsel %vm823, %v1315, 0
    %v1342 = vsel %vm823, %v1316, 0
    %v1345 = vsel %vm823, %v1317, 0
    %v1348 = vsel %vm823, %v1318, 0
    %v1351 = vsel %vm823, %v1319, 0
    %1353 = vmatprep.subr.bf16.mxu0 0
    %1354 = vmatpush1.bf16.xpose.msra.mxu0 %v1330
    %1355 = vmatprep.subr.bf16.mxu0 0
    %1356 = vmatpush1.bf16.xpose.msra.mxu0 %v1333
    %1357 = vmatprep.subr.bf16.mxu0 0
    %1358 = vmatpush1.bf16.xpose.msra.mxu0 %v1336
    %1359 = vmatprep.subr.bf16.mxu0 0
    %1360 = vmatpush1.bf16.xpose.msra.mxu0 %v1339
    %1361 = vmatprep.subr.bf16.mxu0 0
    %1362 = vmatpush1.bf16.xpose.msra.mxu0 %v1342
    %1363 = vmatprep.subr.bf16.mxu0 0
    %1364 = vmatpush1.bf16.xpose.msra.mxu0 %v1345
    %1365 = vmatprep.subr.bf16.mxu0 0
    %1366 = vmatpush1.bf16.xpose.msra.mxu0 %v1348
    %1367 = vmatprep.subr.bf16.mxu0 0
    %1368 = vmatpush1.bf16.xpose.msra.mxu0 %v1351
    %1369 = vmatprep.subr.bf16.mxu0 0
    %1370 = vmatpush1.bf16.xpose.msra.mxu0 0
    %1371 = vmatprep.subr.bf16.mxu0 0
    %1372 = vmatpush1.bf16.xpose.msra.mxu0 0
    %1373 = vmatprep.subr.bf16.mxu0 0
    %1374 = vmatpush1.bf16.xpose.msra.mxu0 0
    %1375 = vmatprep.subr.bf16.mxu0 0
    %1376 = vmatpush1.bf16.xpose.msra.mxu0 0
    %1377 = vmatprep.subr.bf16.mxu0 0
    %1378 = vmatpush1.bf16.xpose.msra.mxu0 0
    %1379 = vmatprep.subr.bf16.mxu0 0
    %1380 = vmatpush1.bf16.xpose.msra.mxu0 0
    %1381 = vmatprep.subr.bf16.mxu0 0
    %1382 = vmatpush1.bf16.xpose.msra.mxu0 0
    %1383 = vmatprep.subr.bf16.mxu0 0
    %1384 = vmatpush1.bf16.xpose.msra.mxu0 0
    %1385 = vmatprep.mubr.bf16.mxu0 0
    %1386 = vmatmul.mubr.bf16.gmra.mrb[0].mxu0 %v1327
    %v1387 = vpop.f32.mrb[0].mxu0
    %v1388 = vadd.f32 %v1324, %v1387
    %v1389 = vpop.f32.mrb[0].mxu0
    %v1390 = vpop.f32.mrb[0].mxu0
    %v1391 = vpop.f32.mrb[0].mxu0
    %1392 = vdwg.mxu0
    %1393 = vst [vmem:[#allocation2] sm:$0x1] %v1388
    // Predicated region
    $region26: #{tpu_custom_call.1} parent=1 // pred_check
      _
    $region27: #{tpu_custom_call.1} parent=1 // pred_check_branch
      %1395 = sbr.rel (0) target = $region29
    $region28: #{tpu_custom_call.1} parent=1 // pred_region
      %s1397 = ssub.s32 16, 16
      %1398 = vsyncadd [#allocation3], %s1397
      %s1400 = sshll.u32 [#allocation2], 4
      %s1401 = int_to_ptr.vmem [resolvable:$true] %s1400
      %1403 = dma.vmem_to_hbm [thread:$0]  %s1401, 16, %s6, [#allocation3]
    $region29: #{tpu_custom_call.1} parent=1 // pred_fallthru
      _
    // Predicated region
    $region30: #{tpu_custom_call.1} parent=1 // pred_check
      _
    $region31: #{tpu_custom_call.1} parent=1 // pred_check_branch
      %1405 = sbr.rel (0) target = $region33
    $region32: #{tpu_custom_call.1} parent=1 // pred_region
      %1406 = dma.done [#allocation3], 16
    $region33: #{tpu_custom_call.1} parent=1 // pred_fallthru
      _
    %1407 = vsyncpa [#allocation3], 1

</llo_original>
